<compile_context>
chip_gen: v6e
topology: v6e:2x2x1
jax: 0.10.0
libtpu: 0.0.40
codegen_flags: <defaults>
</compile_context>

<pallas_src>
import functools

import jax
import jax.numpy as jnp
from jax.experimental import pallas as pl
from jax.experimental.pallas import tpu as pltpu


# ----------------------------------------------------------------------------
# helpers
# ----------------------------------------------------------------------------

def _row_tile(M, target=512):
    """Largest row tile <= target that divides M (multiple of 8), else M."""
    if M <= target:
        return M
    t = target - (target % 8)
    while t >= 8:
        if M % t == 0:
            return t
        t -= 8
    return M


# ----------------------------------------------------------------------------
# Pallas kernels
# ----------------------------------------------------------------------------

def _linear_kernel(x_ref, w_ref, b_ref, o_ref, *, activation):
    # x: (tm, K), w: (K, N), b: (1, N) -> o: (tm, N)
    y = jnp.dot(x_ref[...], w_ref[...], preferred_element_type=jnp.float32)
    y = y + b_ref[...]
    if activation == "relu":
        y = jnp.maximum(y, 0.0)
    o_ref[...] = y.astype(o_ref.dtype)


def linear(x, w, b, activation=None):
    M, K = x.shape
    N = w.shape[1]
    tm = _row_tile(M)
    return pl.pallas_call(
        functools.partial(_linear_kernel, activation=activation),
        out_shape=jax.ShapeDtypeStruct((M, N), x.dtype),
        grid=(M // tm,),
        in_specs=[
            pl.BlockSpec((tm, K), lambda i: (i, 0)),
            pl.BlockSpec((K, N), lambda i: (0, 0)),
            pl.BlockSpec((1, N), lambda i: (0, 0)),
        ],
        out_specs=pl.BlockSpec((tm, N), lambda i: (i, 0)),
        compiler_params=pltpu.CompilerParams(dimension_semantics=("parallel",)),
    )(x, w, b)


def _ffn_kernel(x_ref, w1_ref, b1_ref, w2_ref, b2_ref, o_ref):
    # fused: relu(x @ w1 + b1) @ w2 + b2 ; the (tm, F) intermediate stays in VMEM
    h = jnp.dot(x_ref[...], w1_ref[...], preferred_element_type=jnp.float32)
    h = jnp.maximum(h + b1_ref[...], 0.0)
    y = jnp.dot(h.astype(x_ref.dtype), w2_ref[...],
                preferred_element_type=jnp.float32)
    o_ref[...] = (y + b2_ref[...]).astype(o_ref.dtype)


def ffn(x, p):
    B, S, D = x.shape
    M = B * S
    F = p["ffn1"]["w"].shape[1]
    tm = _row_tile(M)
    y = pl.pallas_call(
        _ffn_kernel,
        out_shape=jax.ShapeDtypeStruct((M, D), x.dtype),
        grid=(M // tm,),
        in_specs=[
            pl.BlockSpec((tm, D), lambda i: (i, 0)),
            pl.BlockSpec((D, F), lambda i: (0, 0)),
            pl.BlockSpec((1, F), lambda i: (0, 0)),
            pl.BlockSpec((F, D), lambda i: (0, 0)),
            pl.BlockSpec((1, D), lambda i: (0, 0)),
        ],
        out_specs=pl.BlockSpec((tm, D), lambda i: (i, 0)),
        compiler_params=pltpu.CompilerParams(dimension_semantics=("parallel",)),
    )(x.reshape(M, D), p["ffn1"]["w"], p["ffn1"]["b"],
      p["ffn2"]["w"], p["ffn2"]["b"])
    return y.reshape(B, S, D)


def _add_ln_kernel(x_ref, r_ref, g_ref, b_ref, o_ref, *, eps):
    # fused residual add + layernorm over the last axis, f32 math
    x = x_ref[...].astype(jnp.float32) + r_ref[...].astype(jnp.float32)
    mu = jnp.mean(x, axis=-1, keepdims=True)
    var = jnp.mean((x - mu) ** 2, axis=-1, keepdims=True)
    y = (x - mu) * jax.lax.rsqrt(var + eps)
    o_ref[...] = (y * g_ref[...] + b_ref[...]).astype(o_ref.dtype)


def add_layernorm(x, res, p, eps=1e-5):
    """LayerNorm(x + res) with the add fused into the kernel."""
    B, S, D = x.shape
    M = B * S
    tm = _row_tile(M)
    y = pl.pallas_call(
        functools.partial(_add_ln_kernel, eps=eps),
        out_shape=jax.ShapeDtypeStruct((M, D), x.dtype),
        grid=(M // tm,),
        in_specs=[
            pl.BlockSpec((tm, D), lambda i: (i, 0)),
            pl.BlockSpec((tm, D), lambda i: (i, 0)),
            pl.BlockSpec((1, D), lambda i: (0, 0)),
            pl.BlockSpec((1, D), lambda i: (0, 0)),
        ],
        out_specs=pl.BlockSpec((tm, D), lambda i: (i, 0)),
        compiler_params=pltpu.CompilerParams(dimension_semantics=("parallel",)),
    )(x.reshape(M, D), res.reshape(M, D), p["g"], p["b"])
    return y.reshape(B, S, D)


def _attention_kernel(q_ref, k_ref, v_ref, m_ref, o_ref, *, n_heads):
    # One batch element per grid step; all heads processed from (S, D) layout.
    # 1/sqrt(Dh) is already folded into the Q projection weights.
    q = q_ref[0]       # (S, D)
    k = k_ref[0]       # (Sk, D)
    v = v_ref[0]       # (Sk, D)
    m = m_ref[0]       # (S, Sk) additive mask
    D = q.shape[-1]
    Dh = D // n_heads
    outs = []
    for h in range(n_heads):
        sl = slice(h * Dh, (h + 1) * Dh)
        qh, kh, vh = q[:, sl], k[:, sl], v[:, sl]
        # contract over Dh directly (no in-kernel k.T / XLU transpose)
        s = jax.lax.dot_general(qh, kh, (((1,), (1,)), ((), ())),
                                preferred_element_type=jnp.float32)
        s = s + m
        s = s - jnp.max(s, axis=-1, keepdims=True)
        p = jnp.exp(s)
        denom = jnp.sum(p, axis=-1, keepdims=True)
        p = p * pl.reciprocal(denom, approx=True)
        outs.append(jnp.dot(p.astype(vh.dtype), vh,
                            preferred_element_type=jnp.float32))
    # concatenate heads in-kernel so the output store is lane-dense (width D)
    o_ref[0] = jnp.concatenate(outs, axis=-1).astype(o_ref.dtype)


def attention(q, k, v, mask_add, n_heads):
    """q: (B,S,D), k/v: (B,Sk,D), mask_add: (B,S,Sk) additive mask."""
    B, S, D = q.shape
    Sk = k.shape[1]
    return pl.pallas_call(
        functools.partial(_attention_kernel, n_heads=n_heads),
        out_shape=jax.ShapeDtypeStruct((B, S, D), q.dtype),
        grid=(B,),
        in_specs=[
            pl.BlockSpec((1, S, D), lambda b: (b, 0, 0)),
            pl.BlockSpec((1, Sk, D), lambda b: (b, 0, 0)),
            pl.BlockSpec((1, Sk, D), lambda b: (b, 0, 0)),
            pl.BlockSpec((1, S, Sk), lambda b: (b, 0, 0)),  # un-broadcast mask
        ],
        out_specs=pl.BlockSpec((1, S, D), lambda b: (b, 0, 0)),
        compiler_params=pltpu.CompilerParams(dimension_semantics=("parallel",)),
    )(q, k, v, mask_add)


# ----------------------------------------------------------------------------
# Model glue (plain JAX): projections / reshapes call the Pallas kernels above
# ----------------------------------------------------------------------------

def mha_self(x, mask_add, p, n_heads):
    """Self-attention: fused QKV projection (one matmul), all heads in-kernel."""
    B, S, D = x.shape
    qkv = linear(x.reshape(B * S, D), p["qkv"]["w"], p["qkv"]["b"])
    qkv = qkv.reshape(B, S, 3 * D)
    q, k, v = qkv[..., :D], qkv[..., D:2 * D], qkv[..., 2 * D:]
    o = attention(q, k, v, mask_add, n_heads)
    o = linear(o.reshape(B * S, D), p["o"]["w"], p["o"]["b"]).reshape(B, S, D)
    return o


def mha_cross(xq, xkv, mask_add, p, n_heads):
    """Cross-attention: Q projection from xq, fused KV projection from xkv."""
    B, S, D = xq.shape
    Sk = xkv.shape[1]
    wq, bq = p["qkv"]["w"][:, :D], p["qkv"]["b"][:, :D]
    wkv, bkv = p["qkv"]["w"][:, D:], p["qkv"]["b"][:, D:]
    q = linear(xq.reshape(B * S, D), wq, bq).reshape(B, S, D)
    kv = linear(xkv.reshape(B * Sk, D), wkv, bkv).reshape(B, Sk, 2 * D)
    k, v = kv[..., :D], kv[..., D:]
    o = attention(q, k, v, mask_add, n_heads)
    o = linear(o.reshape(B * S, D), p["o"]["w"], p["o"]["b"]).reshape(B, S, D)
    return o


def encoder_layer(x, mask_add, p, n_heads):
    x = add_layernorm(mha_self(x, mask_add, p["mha"], n_heads), x, p["ln1"])
    x = add_layernorm(ffn(x, p), x, p["ln2"])
    return x


def decoder_layer(x, enc, self_mask_add, cross_mask_add, p, n_heads):
    x = add_layernorm(mha_self(x, self_mask_add, p["self"], n_heads), x, p["ln1"])
    x = add_layernorm(mha_cross(x, enc, cross_mask_add, p["cross"], n_heads),
                      x, p["ln2"])
    x = add_layernorm(ffn(x, p), x, p["ln3"])
    return x


def server_model_forward(hs, mask, params, cfg):
    """hs: list[attribute_num] of (B, S, D); mask: (B, S) with 1=valid, 0=pad."""
    n_heads = cfg["n_heads"]
    B, S, _ = hs[0].shape

    # additive padding mask (B, S_q, S_k): masked keys get -1e9 (NOT H-broadcast)
    pad_add = (1.0 - mask[:, None, :].astype(jnp.float32)) * -1e9
    pad_add = jnp.broadcast_to(pad_add, (B, S, S))
    # causal + pad mask for decoder self-attention
    causal = jnp.tril(jnp.ones((S, S), jnp.float32))
    causal_add = (1.0 - causal)[None, :, :] * -1e9 + pad_add

    # ----- Encoder: per-attribute layers, then aggregation layers on the mean
    enc_attr = []
    for a in range(cfg["attribute_num"]):
        x = hs[a]
        for l in range(cfg["n_layers"]):
            x = encoder_layer(x, pad_add, params["enc"][a][l], n_heads)
        enc_attr.append(x)
    enc_output = sum(enc_attr) / float(cfg["attribute_num"])
    for l in range(cfg["n_layers_agg"]):
        enc_output = encoder_layer(enc_output, pad_add, params["agg"][l], n_heads)

    # ----- Decoder: per-attribute stacks conditioned on enc_output
    outs = []
    for a in range(cfg["attribute_num"]):
        x = hs[a]
        for l in range(cfg["n_layers"]):
            x = decoder_layer(x, enc_output, causal_add, pad_add,
                              params["dec"][a][l], n_heads)
        outs.append(x)

    # ----- final shift: prepend a zero token, drop the last one (per attribute)
    shifted = []
    for h in outs:
        z = jnp.zeros((h.shape[0], 1, h.shape[2]), dtype=h.dtype)
        shifted.append(jnp.concatenate([z, h[:, :-1, :]], axis=1))
    return shifted


# ----------------------------------------------------------------------------
# Deterministic parameter init
# ----------------------------------------------------------------------------

def _init_linear(key, din, dout):
    return {"w": jax.random.normal(key, (din, dout), jnp.float32) * 0.02,
            "b": jnp.zeros((1, dout), jnp.float32)}


def _init_ln(d):
    return {"g": jnp.ones((1, d), jnp.float32), "b": jnp.zeros((1, d), jnp.float32)}


def _init_mha(key, d, n_heads):
    # fused QKV weight; 1/sqrt(Dh) folded into the Q portion (bias is zero).
    ks = jax.random.split(key, 4)
    scale = 1.0 / ((d // n_heads) ** 0.5)
    wq = jax.random.normal(ks[0], (d, d), jnp.float32) * 0.02 * scale
    wk = jax.random.normal(ks[1], (d, d), jnp.float32) * 0.02
    wv = jax.random.normal(ks[2], (d, d), jnp.float32) * 0.02
    return {"qkv": {"w": jnp.concatenate([wq, wk, wv], axis=1),
                    "b": jnp.zeros((1, 3 * d), jnp.float32)},
            "o": _init_linear(ks[3], d, d)}


def _init_enc_layer(key, d, f, n_heads):
    ks = jax.random.split(key, 3)
    return {"mha": _init_mha(ks[0], d, n_heads), "ln1": _init_ln(d),
            "ffn1": _init_linear(ks[1], d, f), "ffn2": _init_linear(ks[2], f, d),
            "ln2": _init_ln(d)}


def _init_dec_layer(key, d, f, n_heads):
    ks = jax.random.split(key, 4)
    return {"self": _init_mha(ks[0], d, n_heads), "ln1": _init_ln(d),
            "cross": _init_mha(ks[1], d, n_heads), "ln2": _init_ln(d),
            "ffn1": _init_linear(ks[2], d, f), "ffn2": _init_linear(ks[3], f, d),
            "ln3": _init_ln(d)}


def init_params(key, cfg):
    d, f, h = cfg["d_model"], cfg["ffn_hidden"], cfg["n_heads"]
    k_enc, k_agg, k_dec = jax.random.split(key, 3)
    params = {"enc": [], "agg": [], "dec": []}
    for a in range(cfg["attribute_num"]):
        ka = jax.random.fold_in(k_enc, a)
        params["enc"].append([_init_enc_layer(jax.random.fold_in(ka, l), d, f, h)
                              for l in range(cfg["n_layers"])])
    for l in range(cfg["n_layers_agg"]):
        params["agg"].append(_init_enc_layer(jax.random.fold_in(k_agg, l), d, f, h))
    for a in range(cfg["attribute_num"]):
        ka = jax.random.fold_in(k_dec, a)
        params["dec"].append([_init_dec_layer(jax.random.fold_in(ka, l), d, f, h)
                              for l in range(cfg["n_layers"])])
    return params


# ----------------------------------------------------------------------------
# Main
# ----------------------------------------------------------------------------

if __name__ == "__main__":
    cfg = dict(attribute_num=2, max_len=8, d_model=32, ffn_hidden=64,
               n_heads=2, n_layers=1, n_layers_agg=1, drop_prob=0.0)
    B, S, D = 2, cfg["max_len"], cfg["d_model"]

    key = jax.random.PRNGKey(0)
    k_par, k_h0, k_h1 = jax.random.split(key, 3)
    params = init_params(k_par, cfg)

    hs = [jax.random.normal(k_h0, (B, S, D), jnp.float32),
          jax.random.normal(k_h1, (B, S, D), jnp.float32)]
    mask = jnp.ones((B, S), jnp.float32).at[1, -2:].set(0.0)  # pad last 2 of b=1

    fwd = jax.jit(functools.partial(server_model_forward, cfg=cfg))
    out = fwd(hs, mask, params)
    out = [jax.block_until_ready(o) for o in out]

    assert len(out) == cfg["attribute_num"]
    for o in out:
        assert o.shape == (B, S, D)
        assert bool(jnp.all(o[:, 0, :] == 0.0))  # shifted-in zero token
        assert bool(jnp.all(jnp.isfinite(o)))
    print("KERNEL_OK")
</pallas_src>

<mosaic_0001>
module attributes {stable_mosaic.version = 11 : i64} {
  func.func @_linear_kernel(%arg0: i32, %arg1: memref<16x32xf32, #tpu.memory_space<vmem>>, %arg2: memref<32x96xf32, #tpu.memory_space<vmem>>, %arg3: memref<1x96xf32, #tpu.memory_space<vmem>>, %arg4: memref<16x96xf32, #tpu.memory_space<vmem>>) attributes {dimension_semantics = [#tpu.dimension_semantics<parallel>], iteration_bounds = array<i64: 1>, scalar_prefetch = 0 : i64, scratch_operands = 0 : i64, tpu.core_type = #tpu.core_type<tc>, window_params = [{transform_indices = @transform_0, window_bounds = array<i64: 16, 32>}, {pipeline_mode = #tpu.pipeline_mode<synchronous>, transform_indices = @transform_1, window_bounds = array<i64: 32, 96>}, {pipeline_mode = #tpu.pipeline_mode<synchronous>, transform_indices = @transform_2, window_bounds = array<i64: 1, 96>}, {transform_indices = @transform_3, window_bounds = array<i64: 16, 96>}]} {
    %c0 = arith.constant 0 : index
    %c0_0 = arith.constant 0 : index
    %0 = vector.load %arg1[%c0, %c0_0] : memref<16x32xf32, #tpu.memory_space<vmem>>, vector<16x32xf32>
    %c0_1 = arith.constant 0 : index
    %c0_2 = arith.constant 0 : index
    %1 = vector.load %arg2[%c0_1, %c0_2] : memref<32x96xf32, #tpu.memory_space<vmem>>, vector<32x96xf32>
    %cst = arith.constant dense<0.000000e+00> : vector<16x96xf32>
    %2 = tpu.matmul %0, %1, %cst {dimension_numbers = #tpu.dot_dimension_numbers<[1], [0], [0], [1], [0, 0, 1, 1], [], []>} : vector<16x32xf32>, vector<32x96xf32>, vector<16x96xf32> -> vector<16x96xf32>
    %c0_3 = arith.constant 0 : index
    %c0_4 = arith.constant 0 : index
    %3 = vector.load %arg3[%c0_3, %c0_4] : memref<1x96xf32, #tpu.memory_space<vmem>>, vector<1x96xf32>
    %4 = vector.broadcast %3 : vector<1x96xf32> to vector<16x96xf32>
    %5 = arith.addf %2, %4 : vector<16x96xf32>
    %c0_5 = arith.constant 0 : index
    %c0_6 = arith.constant 0 : index
    %6 = vector.load %arg4[%c0_5, %c0_6] : memref<16x96xf32, #tpu.memory_space<vmem>>, vector<16x96xf32>
    tpu.vector_store %arg4[%c0_5, %c0_6], %5 {strides = array<i32>} : memref<16x96xf32, #tpu.memory_space<vmem>>, vector<16x96xf32>,
    return
  }
  func.func @transform_0(%arg0: i32) -> (i32, i32) {
    %c0_i32 = arith.constant 0 : i32
    %c0_i32_0 = arith.constant 0 : i32
    return %arg0, %c0_i32 : i32, i32
  }
  func.func @transform_1(%arg0: i32) -> (i32, i32) {
    %c0_i32 = arith.constant 0 : i32
    %c0_i32_0 = arith.constant 0 : i32
    %c0_i32_1 = arith.constant 0 : i32
    return %c0_i32, %c0_i32_0 : i32, i32
  }
  func.func @transform_2(%arg0: i32) -> (i32, i32) {
    %c0_i32 = arith.constant 0 : i32
    %c0_i32_0 = arith.constant 0 : i32
    %c0_i32_1 = arith.constant 0 : i32
    return %c0_i32, %c0_i32_0 : i32, i32
  }
  func.func @transform_3(%arg0: i32) -> (i32, i32) {
    %c0_i32 = arith.constant 0 : i32
    %c0_i32_0 = arith.constant 0 : i32
    return %arg0, %c0_i32 : i32, i32
  }
}

module attributes {stable_mosaic.version = 11 : i64} {
  func.func @_linear_kernel(%arg0: i32, %arg1: memref<16x32xf32, #tpu.memory_space<vmem>>, %arg2: memref<32x32xf32, #tpu.memory_space<vmem>>, %arg3: memref<1x32xf32, #tpu.memory_space<vmem>>, %arg4: memref<16x32xf32, #tpu.memory_space<vmem>>) attributes {dimension_semantics = [#tpu.dimension_semantics<parallel>], iteration_bounds = array<i64: 1>, scalar_prefetch = 0 : i64, scratch_operands = 0 : i64, tpu.core_type = #tpu.core_type<tc>, window_params = [{transform_indices = @transform_0, window_bounds = array<i64: 16, 32>}, {pipeline_mode = #tpu.pipeline_mode<synchronous>, transform_indices = @transform_1, window_bounds = array<i64: 32, 32>}, {pipeline_mode = #tpu.pipeline_mode<synchronous>, transform_indices = @transform_2, window_bounds = array<i64: 1, 32>}, {transform_indices = @transform_3, window_bounds = array<i64: 16, 32>}]} {
    %c0 = arith.constant 0 : index
    %c0_0 = arith.constant 0 : index
    %0 = vector.load %arg1[%c0, %c0_0] : memref<16x32xf32, #tpu.memory_space<vmem>>, vector<16x32xf32>
    %c0_1 = arith.constant 0 : index
    %c0_2 = arith.constant 0 : index
    %1 = vector.load %arg2[%c0_1, %c0_2] : memref<32x32xf32, #tpu.memory_space<vmem>>, vector<32x32xf32>
    %cst = arith.constant dense<0.000000e+00> : vector<16x32xf32>
    %2 = tpu.matmul %0, %1, %cst {dimension_numbers = #tpu.dot_dimension_numbers<[1], [0], [0], [1], [0, 0, 1, 1], [], []>} : vector<16x32xf32>, vector<32x32xf32>, vector<16x32xf32> -> vector<16x32xf32>
    %c0_3 = arith.constant 0 : index
    %c0_4 = arith.constant 0 : index
    %3 = vector.load %arg3[%c0_3, %c0_4] : memref<1x32xf32, #tpu.memory_space<vmem>>, vector<1x32xf32>
    %4 = vector.broadcast %3 : vector<1x32xf32> to vector<16x32xf32>
    %5 = arith.addf %2, %4 : vector<16x32xf32>
    %c0_5 = arith.constant 0 : index
    %c0_6 = arith.constant 0 : index
    %6 = vector.load %arg4[%c0_5, %c0_6] : memref<16x32xf32, #tpu.memory_space<vmem>>, vector<16x32xf32>
    tpu.vector_store %arg4[%c0_5, %c0_6], %5 {strides = array<i32>} : memref<16x32xf32, #tpu.memory_space<vmem>>, vector<16x32xf32>,
    return
  }
  func.func @transform_0(%arg0: i32) -> (i32, i32) {
    %c0_i32 = arith.constant 0 : i32
    %c0_i32_0 = arith.constant 0 : i32
    return %arg0, %c0_i32 : i32, i32
  }
  func.func @transform_1(%arg0: i32) -> (i32, i32) {
    %c0_i32 = arith.constant 0 : i32
    %c0_i32_0 = arith.constant 0 : i32
    %c0_i32_1 = arith.constant 0 : i32
    return %c0_i32, %c0_i32_0 : i32, i32
  }
  func.func @transform_2(%arg0: i32) -> (i32, i32) {
    %c0_i32 = arith.constant 0 : i32
    %c0_i32_0 = arith.constant 0 : i32
    %c0_i32_1 = arith.constant 0 : i32
    return %c0_i32, %c0_i32_0 : i32, i32
  }
  func.func @transform_3(%arg0: i32) -> (i32, i32) {
    %c0_i32 = arith.constant 0 : i32
    %c0_i32_0 = arith.constant 0 : i32
    return %arg0, %c0_i32 : i32, i32
  }
}

module attributes {stable_mosaic.version = 11 : i64} {
  func.func @_attention_kernel(%arg0: i32, %arg1: memref<1x8x32xf32, #tpu.memory_space<vmem>>, %arg2: memref<1x8x32xf32, #tpu.memory_space<vmem>>, %arg3: memref<1x8x32xf32, #tpu.memory_space<vmem>>, %arg4: memref<1x8x8xf32, #tpu.memory_space<vmem>>, %arg5: memref<1x8x32xf32, #tpu.memory_space<vmem>>) attributes {dimension_semantics = [#tpu.dimension_semantics<parallel>], iteration_bounds = array<i64: 2>, scalar_prefetch = 0 : i64, scratch_operands = 0 : i64, tpu.core_type = #tpu.core_type<tc>, window_params = [{transform_indices = @transform_0, window_bounds = array<i64: 1, 8, 32>}, {transform_indices = @transform_1, window_bounds = array<i64: 1, 8, 32>}, {transform_indices = @transform_2, window_bounds = array<i64: 1, 8, 32>}, {transform_indices = @transform_3, window_bounds = array<i64: 1, 8, 8>}, {transform_indices = @transform_4, window_bounds = array<i64: 1, 8, 32>}]} {
    %c0 = arith.constant 0 : index
    %c0_0 = arith.constant 0 : index
    %c0_1 = arith.constant 0 : index
    %0 = vector.load %arg1[%c0, %c0_0, %c0_1] : memref<1x8x32xf32, #tpu.memory_space<vmem>>, vector<1x8x32xf32>
    %1 = vector.shape_cast %0 : vector<1x8x32xf32> to vector<8x32xf32>
    %c0_2 = arith.constant 0 : index
    %c0_3 = arith.constant 0 : index
    %c0_4 = arith.constant 0 : index
    %2 = vector.load %arg2[%c0_2, %c0_3, %c0_4] : memref<1x8x32xf32, #tpu.memory_space<vmem>>, vector<1x8x32xf32>
    %3 = vector.shape_cast %2 : vector<1x8x32xf32> to vector<8x32xf32>
    %c0_5 = arith.constant 0 : index
    %c0_6 = arith.constant 0 : index
    %c0_7 = arith.constant 0 : index
    %4 = vector.load %arg3[%c0_5, %c0_6, %c0_7] : memref<1x8x32xf32, #tpu.memory_space<vmem>>, vector<1x8x32xf32>
    %5 = vector.shape_cast %4 : vector<1x8x32xf32> to vector<8x32xf32>
    %c0_8 = arith.constant 0 : index
    %c0_9 = arith.constant 0 : index
    %c0_10 = arith.constant 0 : index
    %6 = vector.load %arg4[%c0_8, %c0_9, %c0_10] : memref<1x8x8xf32, #tpu.memory_space<vmem>>, vector<1x8x8xf32>
    %7 = vector.shape_cast %6 : vector<1x8x8xf32> to vector<8x8xf32>
    %8 = vector.extract_strided_slice %1 {offsets = [0, 0], sizes = [8, 16], strides = [1, 1]} : vector<8x32xf32> to vector<8x16xf32>
    %9 = vector.extract_strided_slice %3 {offsets = [0, 0], sizes = [8, 16], strides = [1, 1]} : vector<8x32xf32> to vector<8x16xf32>
    %10 = vector.extract_strided_slice %5 {offsets = [0, 0], sizes = [8, 16], strides = [1, 1]} : vector<8x32xf32> to vector<8x16xf32>
    %cst = arith.constant dense<0.000000e+00> : vector<8x8xf32>
    %11 = tpu.matmul %8, %9, %cst {dimension_numbers = #tpu.dot_dimension_numbers<[1], [1], [0], [0], [0, 0, 1, 0], [], []>} : vector<8x16xf32>, vector<8x16xf32>, vector<8x8xf32> -> vector<8x8xf32>
    %12 = arith.addf %11, %7 : vector<8x8xf32>
    %cst_11 = arith.constant dense<0xFF800000> : vector<8xf32>
    %13 = vector.multi_reduction <maximumf>, %12, %cst_11 [1] : vector<8x8xf32> to vector<8xf32>
    %14 = vector.shape_cast %13 : vector<8xf32> to vector<8x1xf32>
    %15 = vector.broadcast %14 : vector<8x1xf32> to vector<8x8xf32>
    %16 = arith.subf %12, %15 : vector<8x8xf32>
    %17 = math.exp %16 : vector<8x8xf32>
    %cst_12 = arith.constant dense<0.000000e+00> : vector<8xf32>
    %18 = vector.multi_reduction <add>, %17, %cst_12 [1] : vector<8x8xf32> to vector<8xf32>
    %19 = vector.shape_cast %18 : vector<8xf32> to vector<8x1xf32>
    %20 = tpu.reciprocal %19 {approx = true} : vector<8x1xf32> -> vector<8x1xf32>
    %21 = vector.broadcast %20 : vector<8x1xf32> to vector<8x8xf32>
    %22 = arith.mulf %17, %21 : vector<8x8xf32>
    %cst_13 = arith.constant dense<0.000000e+00> : vector<8x16xf32>
    %23 = tpu.matmul %22, %10, %cst_13 {dimension_numbers = #tpu.dot_dimension_numbers<[1], [0], [0], [1], [0, 0, 1, 1], [], []>} : vector<8x8xf32>, vector<8x16xf32>, vector<8x16xf32> -> vector<8x16xf32>
    %24 = vector.extract_strided_slice %1 {offsets = [0, 16], sizes = [8, 16], strides = [1, 1]} : vector<8x32xf32> to vector<8x16xf32>
    %25 = vector.extract_strided_slice %3 {offsets = [0, 16], sizes = [8, 16], strides = [1, 1]} : vector<8x32xf32> to vector<8x16xf32>
    %26 = vector.extract_strided_slice %5 {offsets = [0, 16], sizes = [8, 16], strides = [1, 1]} : vector<8x32xf32> to vector<8x16xf32>
    %cst_14 = arith.constant dense<0.000000e+00> : vector<8x8xf32>
    %27 = tpu.matmul %24, %25, %cst_14 {dimension_numbers = #tpu.dot_dimension_numbers<[1], [1], [0], [0], [0, 0, 1, 0], [], []>} : vector<8x16xf32>, vector<8x16xf32>, vector<8x8xf32> -> vector<8x8xf32>
    %28 = arith.addf %27, %7 : vector<8x8xf32>
    %cst_15 = arith.constant dense<0xFF800000> : vector<8xf32>
    %29 = vector.multi_reduction <maximumf>, %28, %cst_15 [1] : vector<8x8xf32> to vector<8xf32>
    %30 = vector.shape_cast %29 : vector<8xf32> to vector<8x1xf32>
    %31 = vector.broadcast %30 : vector<8x1xf32> to vector<8x8xf32>
    %32 = arith.subf %28, %31 : vector<8x8xf32>
    %33 = math.exp %32 : vector<8x8xf32>
    %cst_16 = arith.constant dense<0.000000e+00> : vector<8xf32>
    %34 = vector.multi_reduction <add>, %33, %cst_16 [1] : vector<8x8xf32> to vector<8xf32>
    %35 = vector.shape_cast %34 : vector<8xf32> to vector<8x1xf32>
    %36 = tpu.reciprocal %35 {approx = true} : vector<8x1xf32> -> vector<8x1xf32>
    %37 = vector.broadcast %36 : vector<8x1xf32> to vector<8x8xf32>
    %38 = arith.mulf %33, %37 : vector<8x8xf32>
    %cst_17 = arith.constant dense<0.000000e+00> : vector<8x16xf32>
    %39 = tpu.matmul %38, %26, %cst_17 {dimension_numbers = #tpu.dot_dimension_numbers<[1], [0], [0], [1], [0, 0, 1, 1], [], []>} : vector<8x8xf32>, vector<8x16xf32>, vector<8x16xf32> -> vector<8x16xf32>
    %40 = tpu.concatenate %23, %39 in 1 : vector<8x16xf32>, vector<8x16xf32> -> vector<8x32xf32>
    %c0_18 = arith.constant 0 : index
    %c0_19 = arith.constant 0 : index
    %c0_20 = arith.constant 0 : index
    %41 = vector.load %arg5[%c0_18, %c0_19, %c0_20] : memref<1x8x32xf32, #tpu.memory_space<vmem>>, vector<1x8x32xf32>
    %42 = vector.shape_cast %41 : vector<1x8x32xf32> to vector<8x32xf32>
    %43 = vector.shape_cast %40 : vector<8x32xf32> to vector<1x8x32xf32>
    tpu.vector_store %arg5[%c0_18, %c0_19, %c0_20], %43 {strides = array<i32>} : memref<1x8x32xf32, #tpu.memory_space<vmem>>, vector<1x8x32xf32>,
    return
  }
  func.func @transform_0(%arg0: i32) -> (i32, i32, i32) {
    %c0_i32 = arith.constant 0 : i32
    %c0_i32_0 = arith.constant 0 : i32
    %c0_i32_1 = arith.constant 0 : i32
    return %arg0, %c0_i32, %c0_i32_0 : i32, i32, i32
  }
  func.func @transform_1(%arg0: i32) -> (i32, i32, i32) {
    %c0_i32 = arith.constant 0 : i32
    %c0_i32_0 = arith.constant 0 : i32
    %c0_i32_1 = arith.constant 0 : i32
    return %arg0, %c0_i32, %c0_i32_0 : i32, i32, i32
  }
  func.func @transform_2(%arg0: i32) -> (i32, i32, i32) {
    %c0_i32 = arith.constant 0 : i32
    %c0_i32_0 = arith.constant 0 : i32
    %c0_i32_1 = arith.constant 0 : i32
    return %arg0, %c0_i32, %c0_i32_0 : i32, i32, i32
  }
  func.func @transform_3(%arg0: i32) -> (i32, i32, i32) {
    %c0_i32 = arith.constant 0 : i32
    %c0_i32_0 = arith.constant 0 : i32
    %c0_i32_1 = arith.constant 0 : i32
    return %arg0, %c0_i32, %c0_i32_0 : i32, i32, i32
  }
  func.func @transform_4(%arg0: i32) -> (i32, i32, i32) {
    %c0_i32 = arith.constant 0 : i32
    %c0_i32_0 = arith.constant 0 : i32
    %c0_i32_1 = arith.constant 0 : i32
    return %arg0, %c0_i32, %c0_i32_0 : i32, i32, i32
  }
}

module attributes {stable_mosaic.version = 11 : i64} {
  func.func @_add_ln_kernel(%arg0: i32, %arg1: memref<16x32xf32, #tpu.memory_space<vmem>>, %arg2: memref<16x32xf32, #tpu.memory_space<vmem>>, %arg3: memref<1x32xf32, #tpu.memory_space<vmem>>, %arg4: memref<1x32xf32, #tpu.memory_space<vmem>>, %arg5: memref<16x32xf32, #tpu.memory_space<vmem>>) attributes {dimension_semantics = [#tpu.dimension_semantics<parallel>], iteration_bounds = array<i64: 1>, scalar_prefetch = 0 : i64, scratch_operands = 0 : i64, tpu.core_type = #tpu.core_type<tc>, window_params = [{transform_indices = @transform_0, window_bounds = array<i64: 16, 32>}, {transform_indices = @transform_1, window_bounds = array<i64: 16, 32>}, {pipeline_mode = #tpu.pipeline_mode<synchronous>, transform_indices = @transform_2, window_bounds = array<i64: 1, 32>}, {pipeline_mode = #tpu.pipeline_mode<synchronous>, transform_indices = @transform_3, window_bounds = array<i64: 1, 32>}, {transform_indices = @transform_4, window_bounds = array<i64: 16, 32>}]} {
    %c0 = arith.constant 0 : index
    %c0_0 = arith.constant 0 : index
    %0 = vector.load %arg1[%c0, %c0_0] : memref<16x32xf32, #tpu.memory_space<vmem>>, vector<16x32xf32>
    %c0_1 = arith.constant 0 : index
    %c0_2 = arith.constant 0 : index
    %1 = vector.load %arg2[%c0_1, %c0_2] : memref<16x32xf32, #tpu.memory_space<vmem>>, vector<16x32xf32>
    %2 = arith.addf %0, %1 : vector<16x32xf32>
    %cst = arith.constant dense<0.000000e+00> : vector<16xf32>
    %3 = vector.multi_reduction <add>, %2, %cst [1] : vector<16x32xf32> to vector<16xf32>
    %4 = vector.shape_cast %3 : vector<16xf32> to vector<16x1xf32>
    %cst_3 = arith.constant 3.200000e+01 : f32
    %5 = vector.broadcast %cst_3 : f32 to vector<16x1xf32>
    %6 = arith.divf %4, %5 : vector<16x1xf32>
    %7 = vector.broadcast %6 : vector<16x1xf32> to vector<16x32xf32>
    %8 = arith.subf %2, %7 : vector<16x32xf32>
    %9 = arith.mulf %8, %8 : vector<16x32xf32>
    %cst_4 = arith.constant dense<0.000000e+00> : vector<16xf32>
    %10 = vector.multi_reduction <add>, %9, %cst_4 [1] : vector<16x32xf32> to vector<16xf32>
    %11 = vector.shape_cast %10 : vector<16xf32> to vector<16x1xf32>
    %cst_5 = arith.constant 3.200000e+01 : f32
    %12 = vector.broadcast %cst_5 : f32 to vector<16x1xf32>
    %13 = arith.divf %11, %12 : vector<16x1xf32>
    %14 = vector.broadcast %6 : vector<16x1xf32> to vector<16x32xf32>
    %15 = arith.subf %2, %14 : vector<16x32xf32>
    %cst_6 = arith.constant 9.99999974E-6 : f32
    %16 = vector.broadcast %cst_6 : f32 to vector<16x1xf32>
    %17 = arith.addf %13, %16 : vector<16x1xf32>
    %18 = math.rsqrt %17 : vector<16x1xf32>
    %19 = vector.broadcast %18 : vector<16x1xf32> to vector<16x32xf32>
    %20 = arith.mulf %15, %19 : vector<16x32xf32>
    %c0_7 = arith.constant 0 : index
    %c0_8 = arith.constant 0 : index
    %21 = vector.load %arg3[%c0_7, %c0_8] : memref<1x32xf32, #tpu.memory_space<vmem>>, vector<1x32xf32>
    %22 = vector.broadcast %21 : vector<1x32xf32> to vector<16x32xf32>
    %23 = arith.mulf %20, %22 : vector<16x32xf32>
    %c0_9 = arith.constant 0 : index
    %c0_10 = arith.constant 0 : index
    %24 = vector.load %arg4[%c0_9, %c0_10] : memref<1x32xf32, #tpu.memory_space<vmem>>, vector<1x32xf32>
    %25 = vector.broadcast %24 : vector<1x32xf32> to vector<16x32xf32>
    %26 = arith.addf %23, %25 : vector<16x32xf32>
    %c0_11 = arith.constant 0 : index
    %c0_12 = arith.constant 0 : index
    %27 = vector.load %arg5[%c0_11, %c0_12] : memref<16x32xf32, #tpu.memory_space<vmem>>, vector<16x32xf32>
    tpu.vector_store %arg5[%c0_11, %c0_12], %26 {strides = array<i32>} : memref<16x32xf32, #tpu.memory_space<vmem>>, vector<16x32xf32>,
    return
  }
  func.func @transform_0(%arg0: i32) -> (i32, i32) {
    %c0_i32 = arith.constant 0 : i32
    %c0_i32_0 = arith.constant 0 : i32
    return %arg0, %c0_i32 : i32, i32
  }
  func.func @transform_1(%arg0: i32) -> (i32, i32) {
    %c0_i32 = arith.constant 0 : i32
    %c0_i32_0 = arith.constant 0 : i32
    return %arg0, %c0_i32 : i32, i32
  }
  func.func @transform_2(%arg0: i32) -> (i32, i32) {
    %c0_i32 = arith.constant 0 : i32
    %c0_i32_0 = arith.constant 0 : i32
    %c0_i32_1 = arith.constant 0 : i32
    return %c0_i32, %c0_i32_0 : i32, i32
  }
  func.func @transform_3(%arg0: i32) -> (i32, i32) {
    %c0_i32 = arith.constant 0 : i32
    %c0_i32_0 = arith.constant 0 : i32
    %c0_i32_1 = arith.constant 0 : i32
    return %c0_i32, %c0_i32_0 : i32, i32
  }
  func.func @transform_4(%arg0: i32) -> (i32, i32) {
    %c0_i32 = arith.constant 0 : i32
    %c0_i32_0 = arith.constant 0 : i32
    return %arg0, %c0_i32 : i32, i32
  }
}

module attributes {stable_mosaic.version = 11 : i64} {
  func.func @_ffn_kernel(%arg0: i32, %arg1: memref<16x32xf32, #tpu.memory_space<vmem>>, %arg2: memref<32x64xf32, #tpu.memory_space<vmem>>, %arg3: memref<1x64xf32, #tpu.memory_space<vmem>>, %arg4: memref<64x32xf32, #tpu.memory_space<vmem>>, %arg5: memref<1x32xf32, #tpu.memory_space<vmem>>, %arg6: memref<16x32xf32, #tpu.memory_space<vmem>>) attributes {dimension_semantics = [#tpu.dimension_semantics<parallel>], iteration_bounds = array<i64: 1>, scalar_prefetch = 0 : i64, scratch_operands = 0 : i64, tpu.core_type = #tpu.core_type<tc>, window_params = [{transform_indices = @transform_0, window_bounds = array<i64: 16, 32>}, {pipeline_mode = #tpu.pipeline_mode<synchronous>, transform_indices = @transform_1, window_bounds = array<i64: 32, 64>}, {pipeline_mode = #tpu.pipeline_mode<synchronous>, transform_indices = @transform_2, window_bounds = array<i64: 1, 64>}, {pipeline_mode = #tpu.pipeline_mode<synchronous>, transform_indices = @transform_3, window_bounds = array<i64: 64, 32>}, {pipeline_mode = #tpu.pipeline_mode<synchronous>, transform_indices = @transform_4, window_bounds = array<i64: 1, 32>}, {transform_indices = @transform_5, window_bounds = array<i64: 16, 32>}]} {
    %c0 = arith.constant 0 : index
    %c0_0 = arith.constant 0 : index
    %0 = vector.load %arg1[%c0, %c0_0] : memref<16x32xf32, #tpu.memory_space<vmem>>, vector<16x32xf32>
    %c0_1 = arith.constant 0 : index
    %c0_2 = arith.constant 0 : index
    %1 = vector.load %arg2[%c0_1, %c0_2] : memref<32x64xf32, #tpu.memory_space<vmem>>, vector<32x64xf32>
    %cst = arith.constant dense<0.000000e+00> : vector<16x64xf32>
    %2 = tpu.matmul %0, %1, %cst {dimension_numbers = #tpu.dot_dimension_numbers<[1], [0], [0], [1], [0, 0, 1, 1], [], []>} : vector<16x32xf32>, vector<32x64xf32>, vector<16x64xf32> -> vector<16x64xf32>
    %c0_3 = arith.constant 0 : index
    %c0_4 = arith.constant 0 : index
    %3 = vector.load %arg3[%c0_3, %c0_4] : memref<1x64xf32, #tpu.memory_space<vmem>>, vector<1x64xf32>
    %4 = vector.broadcast %3 : vector<1x64xf32> to vector<16x64xf32>
    %5 = arith.addf %2, %4 : vector<16x64xf32>
    %cst_5 = arith.constant 0.000000e+00 : f32
    %6 = vector.broadcast %cst_5 : f32 to vector<16x64xf32>
    %7 = arith.maximumf %5, %6 : vector<16x64xf32>
    %c0_6 = arith.constant 0 : index
    %c0_7 = arith.constant 0 : index
    %8 = vector.load %arg4[%c0_6, %c0_7] : memref<64x32xf32, #tpu.memory_space<vmem>>, vector<64x32xf32>
    %cst_8 = arith.constant dense<0.000000e+00> : vector<16x32xf32>
    %9 = tpu.matmul %7, %8, %cst_8 {dimension_numbers = #tpu.dot_dimension_numbers<[1], [0], [0], [1], [0, 0, 1, 1], [], []>} : vector<16x64xf32>, vector<64x32xf32>, vector<16x32xf32> -> vector<16x32xf32>
    %c0_9 = arith.constant 0 : index
    %c0_10 = arith.constant 0 : index
    %10 = vector.load %arg5[%c0_9, %c0_10] : memref<1x32xf32, #tpu.memory_space<vmem>>, vector<1x32xf32>
    %11 = vector.broadcast %10 : vector<1x32xf32> to vector<16x32xf32>
    %12 = arith.addf %9, %11 : vector<16x32xf32>
    %c0_11 = arith.constant 0 : index
    %c0_12 = arith.constant 0 : index
    %13 = vector.load %arg6[%c0_11, %c0_12] : memref<16x32xf32, #tpu.memory_space<vmem>>, vector<16x32xf32>
    tpu.vector_store %arg6[%c0_11, %c0_12], %12 {strides = array<i32>} : memref<16x32xf32, #tpu.memory_space<vmem>>, vector<16x32xf32>,
    return
  }
  func.func @transform_0(%arg0: i32) -> (i32, i32) {
    %c0_i32 = arith.constant 0 : i32
    %c0_i32_0 = arith.constant 0 : i32
    return %arg0, %c0_i32 : i32, i32
  }
  func.func @transform_1(%arg0: i32) -> (i32, i32) {
    %c0_i32 = arith.constant 0 : i32
    %c0_i32_0 = arith.constant 0 : i32
    %c0_i32_1 = arith.constant 0 : i32
    return %c0_i32, %c0_i32_0 : i32, i32
  }
  func.func @transform_2(%arg0: i32) -> (i32, i32) {
    %c0_i32 = arith.constant 0 : i32
    %c0_i32_0 = arith.constant 0 : i32
    %c0_i32_1 = arith.constant 0 : i32
    return %c0_i32, %c0_i32_0 : i32, i32
  }
  func.func @transform_3(%arg0: i32) -> (i32, i32) {
    %c0_i32 = arith.constant 0 : i32
    %c0_i32_0 = arith.constant 0 : i32
    %c0_i32_1 = arith.constant 0 : i32
    return %c0_i32, %c0_i32_0 : i32, i32
  }
  func.func @transform_4(%arg0: i32) -> (i32, i32) {
    %c0_i32 = arith.constant 0 : i32
    %c0_i32_0 = arith.constant 0 : i32
    %c0_i32_1 = arith.constant 0 : i32
    return %c0_i32, %c0_i32_0 : i32, i32
  }
  func.func @transform_5(%arg0: i32) -> (i32, i32) {
    %c0_i32 = arith.constant 0 : i32
    %c0_i32_0 = arith.constant 0 : i32
    return %arg0, %c0_i32 : i32, i32
  }
}

module attributes {stable_mosaic.version = 11 : i64} {
  func.func @_linear_kernel(%arg0: i32, %arg1: memref<16x32xf32, #tpu.memory_space<vmem>>, %arg2: memref<32x64xf32, #tpu.memory_space<vmem>>, %arg3: memref<1x64xf32, #tpu.memory_space<vmem>>, %arg4: memref<16x64xf32, #tpu.memory_space<vmem>>) attributes {dimension_semantics = [#tpu.dimension_semantics<parallel>], iteration_bounds = array<i64: 1>, scalar_prefetch = 0 : i64, scratch_operands = 0 : i64, tpu.core_type = #tpu.core_type<tc>, window_params = [{transform_indices = @transform_0, window_bounds = array<i64: 16, 32>}, {pipeline_mode = #tpu.pipeline_mode<synchronous>, transform_indices = @transform_1, window_bounds = array<i64: 32, 64>}, {pipeline_mode = #tpu.pipeline_mode<synchronous>, transform_indices = @transform_2, window_bounds = array<i64: 1, 64>}, {transform_indices = @transform_3, window_bounds = array<i64: 16, 64>}]} {
    %c0 = arith.constant 0 : index
    %c0_0 = arith.constant 0 : index
    %0 = vector.load %arg1[%c0, %c0_0] : memref<16x32xf32, #tpu.memory_space<vmem>>, vector<16x32xf32>
    %c0_1 = arith.constant 0 : index
    %c0_2 = arith.constant 0 : index
    %1 = vector.load %arg2[%c0_1, %c0_2] : memref<32x64xf32, #tpu.memory_space<vmem>>, vector<32x64xf32>
    %cst = arith.constant dense<0.000000e+00> : vector<16x64xf32>
    %2 = tpu.matmul %0, %1, %cst {dimension_numbers = #tpu.dot_dimension_numbers<[1], [0], [0], [1], [0, 0, 1, 1], [], []>} : vector<16x32xf32>, vector<32x64xf32>, vector<16x64xf32> -> vector<16x64xf32>
    %c0_3 = arith.constant 0 : index
    %c0_4 = arith.constant 0 : index
    %3 = vector.load %arg3[%c0_3, %c0_4] : memref<1x64xf32, #tpu.memory_space<vmem>>, vector<1x64xf32>
    %4 = vector.broadcast %3 : vector<1x64xf32> to vector<16x64xf32>
    %5 = arith.addf %2, %4 : vector<16x64xf32>
    %c0_5 = arith.constant 0 : index
    %c0_6 = arith.constant 0 : index
    %6 = vector.load %arg4[%c0_5, %c0_6] : memref<16x64xf32, #tpu.memory_space<vmem>>, vector<16x64xf32>
    tpu.vector_store %arg4[%c0_5, %c0_6], %5 {strides = array<i32>} : memref<16x64xf32, #tpu.memory_space<vmem>>, vector<16x64xf32>,
    return
  }
  func.func @transform_0(%arg0: i32) -> (i32, i32) {
    %c0_i32 = arith.constant 0 : i32
    %c0_i32_0 = arith.constant 0 : i32
    return %arg0, %c0_i32 : i32, i32
  }
  func.func @transform_1(%arg0: i32) -> (i32, i32) {
    %c0_i32 = arith.constant 0 : i32
    %c0_i32_0 = arith.constant 0 : i32
    %c0_i32_1 = arith.constant 0 : i32
    return %c0_i32, %c0_i32_0 : i32, i32
  }
  func.func @transform_2(%arg0: i32) -> (i32, i32) {
    %c0_i32 = arith.constant 0 : i32
    %c0_i32_0 = arith.constant 0 : i32
    %c0_i32_1 = arith.constant 0 : i32
    return %c0_i32, %c0_i32_0 : i32, i32
  }
  func.func @transform_3(%arg0: i32) -> (i32, i32) {
    %c0_i32 = arith.constant 0 : i32
    %c0_i32_0 = arith.constant 0 : i32
    return %arg0, %c0_i32 : i32, i32
  }
}

</mosaic_0001>

<llo_original>
// kernel: server_model_forward.46
$region0: #{server_model_forward.46}
  #allocation0 [shape = 'u32[]', space=smem, size = 0x4, offset = 0x4, fixed_abs, tag = 'smem constant byte address 0x4 - core index']
  #allocation1 [shape = 'u32[144,128]{1,0:T(1,128)}', space=vmem, size = 0x12000, scoped, tag = 'internal scratch']
  %s0 = inlined_call_operand.vmem [shape: f32[16,32], index: 0, kind: input, shape index: {}]
  %s1 = inlined_call_operand.vmem [shape: f32[32,96], index: 1, kind: input, shape index: {}]
  %s2 = inlined_call_operand.vmem [shape: f32[1,96], index: 2, kind: input, shape index: {}]
  %s3 = inlined_call_operand.vmem [shape: f32[16,96], index: 3, kind: output, shape index: {}]
  %s4 = sld [smem:[#allocation0]]
  $region22: #{server_model_forward.46} parent=0
    _
  %s6 = ssub.s32 1, %s4
  %s7 = scalar_select 0, %s6, %s4
  // Predicated region
  $region2: #{server_model_forward.46} parent=0 // pred_check
    _
  $region3: #{server_model_forward.46} parent=0 // pred_check_branch
    %9 = sbr.rel (0) target = $region5
  $region4: #{server_model_forward.46} parent=0 // pred_region
    _
  $region5: #{server_model_forward.46} parent=0 // pred_fallthru
    _
  // Predicated region
  $region6: #{server_model_forward.46} parent=0 // pred_check
    _
  $region7: #{server_model_forward.46} parent=0 // pred_check_branch
    %11 = sbr.rel (0) target = $region9
  $region8: #{server_model_forward.46} parent=0 // pred_region
    _
  $region9: #{server_model_forward.46} parent=0 // pred_fallthru
    _
  // Predicated region
  $region10: #{server_model_forward.46} parent=0 // pred_check
    _
  $region11: #{server_model_forward.46} parent=0 // pred_check_branch
    %13 = sbr.rel (0) target = $region13
  $region12: #{server_model_forward.46} parent=0 // pred_region
    _
  $region13: #{server_model_forward.46} parent=0 // pred_fallthru
    _
  %v14 = vld [vmem:[%s0] sm:$0xff]
  %v15 = vld [vmem:[%s0 + $0x8] sm:$0xff]
  %v16 = vld [vmem:[%s1] sm:$0xff]
  %v17 = vld [vmem:[%s1 + $0x8] sm:$0xff]
  %v18 = vld [vmem:[%s1 + $0x10] sm:$0xff]
  %v19 = vld [vmem:[%s1 + $0x18] sm:$0xff]
  %v20 = vld [vmem:[%s2] sm:$0x1]
  %v22 = vlaneseq
  %v23 = vshrl.u32 %v22, 7
  %v24 = vsub.s32 0, %v23
  %v25 = vrot.slane %v20, %v24
  %vm27 = vcmask 261120
  %v29 = vsel %vm27, %v14, 0
  %v32 = vsel %vm27, %v15, 0
  %34 = vmatprep.subr.mxu0 0.0
  %35 = vmatpush1.msra.mxu0 0.0
  %36 = vmatprep.subr.mxu0 0.0
  %37 = vmatpush1.msra.mxu0 0.0
  %38 = vmatprep.subr.mxu0 0.0
  %39 = vmatpush1.msra.mxu0 0.0
  %40 = vmatprep.subr.mxu0 0.0
  %41 = vmatpush1.msra.mxu0 0.0
  %42 = vmatprep.subr.mxu0 0.0
  %43 = vmatpush1.msra.mxu0 0.0
  %44 = vmatprep.subr.mxu0 0.0
  %45 = vmatpush1.msra.mxu0 0.0
  %46 = vmatprep.subr.mxu0 0.0
  %47 = vmatpush1.msra.mxu0 0.0
  %48 = vmatprep.subr.mxu0 0.0
  %49 = vmatpush1.msra.mxu0 0.0
  %50 = vmatprep.subr.mxu0 0.0
  %51 = vmatpush1.msra.mxu0 0.0
  %52 = vmatprep.subr.mxu0 0.0
  %53 = vmatpush1.msra.mxu0 0.0
  %54 = vmatprep.subr.mxu0 0.0
  %55 = vmatpush1.msra.mxu0 0.0
  %56 = vmatprep.subr.mxu0 0.0
  %57 = vmatpush1.msra.mxu0 0.0
  %58 = vmatprep.subr.mxu0 0.0
  %59 = vmatpush1.msra.mxu0 %v19
  %60 = vmatprep.subr.mxu0 0.0
  %61 = vmatpush1.msra.mxu0 %v18
  %62 = vmatprep.subr.mxu0 0.0
  %63 = vmatpush1.msra.mxu0 %v17
  %64 = vmatprep.subr.mxu0 0.0
  %65 = vmatpush1.msra.mxu0 %v16
  %66 = vmatprep.subr.mxu0 0.0
  %67 = vmatpush2.msra.mxu0 0.0
  %68 = vmatprep.subr.mxu0 0.0
  %69 = vmatpush2.msra.mxu0 0.0
  %70 = vmatprep.subr.mxu0 0.0
  %71 = vmatpush2.msra.mxu0 0.0
  %72 = vmatprep.subr.mxu0 0.0
  %73 = vmatpush2.msra.mxu0 0.0
  %74 = vmatprep.subr.mxu0 0.0
  %75 = vmatpush2.msra.mxu0 0.0
  %76 = vmatprep.subr.mxu0 0.0
  %77 = vmatpush2.msra.mxu0 0.0
  %78 = vmatprep.subr.mxu0 0.0
  %79 = vmatpush2.msra.mxu0 0.0
  %80 = vmatprep.subr.mxu0 0.0
  %81 = vmatpush2.msra.mxu0 0.0
  %82 = vmatprep.subr.mxu0 0.0
  %83 = vmatpush2.msra.mxu0 0.0
  %84 = vmatprep.subr.mxu0 0.0
  %85 = vmatpush2.msra.mxu0 0.0
  %86 = vmatprep.subr.mxu0 0.0
  %87 = vmatpush2.msra.mxu0 0.0
  %88 = vmatprep.subr.mxu0 0.0
  %89 = vmatpush2.msra.mxu0 0.0
  %90 = vmatprep.subr.mxu0 0.0
  %91 = vmatpush2.msra.mxu0 0.0
  %92 = vmatprep.subr.mxu0 0.0
  %93 = vmatpush2.msra.mxu0 0.0
  %94 = vmatprep.subr.mxu0 0.0
  %95 = vmatpush2.msra.mxu0 0.0
  %96 = vmatprep.subr.mxu0 0.0
  %97 = vmatpush2.msra.mxu0 0.0
  %98 = vmatprep.mubr.f32.mxu0 0.0
  %99 = vmatmul.mubr.f32.gmra.mxu0 %v29
  %v100 = vpop.f32.mrf.mxu0
  %v101 = vadd.f32 %v25, %v100
  %v102 = vpop.f32.mrf.mxu0
  %103 = vmatprep.mubr.f32.mxu0 0.0
  %104 = vmatmul.mubr.f32.gmra.mxu0 %v32
  %v105 = vpop.f32.mrf.mxu0
  %v106 = vadd.f32 %v25, %v105
  %v107 = vpop.f32.mrf.mxu0
  %108 = vdwg.mxu0
  %vm109 = vcmask 785408
  %110 = vst.msk [vmem:[%s3] sm:$0xff] %vm109, %v101
  %111 = vst.msk [vmem:[%s3 + $0x8] sm:$0xff] %vm109, %v106
  // Predicated region
  $region14: #{server_model_forward.46} parent=0 // pred_check
    _
  $region15: #{server_model_forward.46} parent=0 // pred_check_branch
    %113 = sbr.rel (0) target = $region17
  $region16: #{server_model_forward.46} parent=0 // pred_region
    _
  $region17: #{server_model_forward.46} parent=0 // pred_fallthru
    _
  // Predicated region
  $region18: #{server_model_forward.46} parent=0 // pred_check
    _
  $region19: #{server_model_forward.46} parent=0 // pred_check_branch
    %115 = sbr.rel (0) target = $region21
  $region20: #{server_model_forward.46} parent=0 // pred_region
    _
  $region21: #{server_model_forward.46} parent=0 // pred_fallthru
    _

// kernel: server_model_forward.48
$region0: #{server_model_forward.48}
  #allocation0 [shape = 'u32[]', space=smem, size = 0x4, offset = 0x4, fixed_abs, tag = 'smem constant byte address 0x4 - core index']
  #allocation1 [shape = 'u32[144,128]{1,0:T(1,128)}', space=vmem, size = 0x12000, scoped, tag = 'internal scratch']
  %s0 = inlined_call_operand.vmem [shape: f32[16,32], index: 0, kind: input, shape index: {}]
  %s1 = inlined_call_operand.vmem [shape: f32[32,32], index: 1, kind: input, shape index: {}]
  %s2 = inlined_call_operand.vmem [shape: f32[1,32], index: 2, kind: input, shape index: {}]
  %s3 = inlined_call_operand.vmem [shape: f32[16,32], index: 3, kind: output, shape index: {}]
  %s4 = sld [smem:[#allocation0]]
  $region22: #{server_model_forward.48} parent=0
    _
  %s6 = ssub.s32 1, %s4
  %s7 = scalar_select 0, %s6, %s4
  // Predicated region
  $region2: #{server_model_forward.48} parent=0 // pred_check
    _
  $region3: #{server_model_forward.48} parent=0 // pred_check_branch
    %9 = sbr.rel (0) target = $region5
  $region4: #{server_model_forward.48} parent=0 // pred_region
    _
  $region5: #{server_model_forward.48} parent=0 // pred_fallthru
    _
  // Predicated region
  $region6: #{server_model_forward.48} parent=0 // pred_check
    _
  $region7: #{server_model_forward.48} parent=0 // pred_check_branch
    %11 = sbr.rel (0) target = $region9
  $region8: #{server_model_forward.48} parent=0 // pred_region
    _
  $region9: #{server_model_forward.48} parent=0 // pred_fallthru
    _
  // Predicated region
  $region10: #{server_model_forward.48} parent=0 // pred_check
    _
  $region11: #{server_model_forward.48} parent=0 // pred_check_branch
    %13 = sbr.rel (0) target = $region13
  $region12: #{server_model_forward.48} parent=0 // pred_region
    _
  $region13: #{server_model_forward.48} parent=0 // pred_fallthru
    _
  %v14 = vld [vmem:[%s0] sm:$0xff]
  %v15 = vld [vmem:[%s0 + $0x8] sm:$0xff]
  %v16 = vld [vmem:[%s1] sm:$0xff]
  %v17 = vld [vmem:[%s1 + $0x8] sm:$0xff]
  %v18 = vld [vmem:[%s1 + $0x10] sm:$0xff]
  %v19 = vld [vmem:[%s1 + $0x18] sm:$0xff]
  %v20 = vld [vmem:[%s2] sm:$0x1]
  %v22 = vlaneseq
  %v23 = vshrl.u32 %v22, 7
  %v24 = vsub.s32 0, %v23
  %v25 = vrot.slane %v20, %v24
  %vm27 = vcmask 261120
  %v29 = vsel %vm27, %v14, 0
  %v32 = vsel %vm27, %v15, 0
  %34 = vmatprep.subr.mxu0 0.0
  %35 = vmatpush1.msra.mxu0 0.0
  %36 = vmatprep.subr.mxu0 0.0
  %37 = vmatpush1.msra.mxu0 0.0
  %38 = vmatprep.subr.mxu0 0.0
  %39 = vmatpush1.msra.mxu0 0.0
  %40 = vmatprep.subr.mxu0 0.0
  %41 = vmatpush1.msra.mxu0 0.0
  %42 = vmatprep.subr.mxu0 0.0
  %43 = vmatpush1.msra.mxu0 0.0
  %44 = vmatprep.subr.mxu0 0.0
  %45 = vmatpush1.msra.mxu0 0.0
  %46 = vmatprep.subr.mxu0 0.0
  %47 = vmatpush1.msra.mxu0 0.0
  %48 = vmatprep.subr.mxu0 0.0
  %49 = vmatpush1.msra.mxu0 0.0
  %50 = vmatprep.subr.mxu0 0.0
  %51 = vmatpush1.msra.mxu0 0.0
  %52 = vmatprep.subr.mxu0 0.0
  %53 = vmatpush1.msra.mxu0 0.0
  %54 = vmatprep.subr.mxu0 0.0
  %55 = vmatpush1.msra.mxu0 0.0
  %56 = vmatprep.subr.mxu0 0.0
  %57 = vmatpush1.msra.mxu0 0.0
  %58 = vmatprep.subr.mxu0 0.0
  %59 = vmatpush1.msra.mxu0 %v19
  %60 = vmatprep.subr.mxu0 0.0
  %61 = vmatpush1.msra.mxu0 %v18
  %62 = vmatprep.subr.mxu0 0.0
  %63 = vmatpush1.msra.mxu0 %v17
  %64 = vmatprep.subr.mxu0 0.0
  %65 = vmatpush1.msra.mxu0 %v16
  %66 = vmatprep.subr.mxu0 0.0
  %67 = vmatpush2.msra.mxu0 0.0
  %68 = vmatprep.subr.mxu0 0.0
  %69 = vmatpush2.msra.mxu0 0.0
  %70 = vmatprep.subr.mxu0 0.0
  %71 = vmatpush2.msra.mxu0 0.0
  %72 = vmatprep.subr.mxu0 0.0
  %73 = vmatpush2.msra.mxu0 0.0
  %74 = vmatprep.subr.mxu0 0.0
  %75 = vmatpush2.msra.mxu0 0.0
  %76 = vmatprep.subr.mxu0 0.0
  %77 = vmatpush2.msra.mxu0 0.0
  %78 = vmatprep.subr.mxu0 0.0
  %79 = vmatpush2.msra.mxu0 0.0
  %80 = vmatprep.subr.mxu0 0.0
  %81 = vmatpush2.msra.mxu0 0.0
  %82 = vmatprep.subr.mxu0 0.0
  %83 = vmatpush2.msra.mxu0 0.0
  %84 = vmatprep.subr.mxu0 0.0
  %85 = vmatpush2.msra.mxu0 0.0
  %86 = vmatprep.subr.mxu0 0.0
  %87 = vmatpush2.msra.mxu0 0.0
  %88 = vmatprep.subr.mxu0 0.0
  %89 = vmatpush2.msra.mxu0 0.0
  %90 = vmatprep.subr.mxu0 0.0
  %91 = vmatpush2.msra.mxu0 0.0
  %92 = vmatprep.subr.mxu0 0.0
  %93 = vmatpush2.msra.mxu0 0.0
  %94 = vmatprep.subr.mxu0 0.0
  %95 = vmatpush2.msra.mxu0 0.0
  %96 = vmatprep.subr.mxu0 0.0
  %97 = vmatpush2.msra.mxu0 0.0
  %98 = vmatprep.mubr.f32.mxu0 0.0
  %99 = vmatmul.mubr.f32.gmra.mxu0 %v29
  %v100 = vpop.f32.mrf.mxu0
  %v101 = vadd.f32 %v25, %v100
  %v102 = vpop.f32.mrf.mxu0
  %103 = vmatprep.mubr.f32.mxu0 0.0
  %104 = vmatmul.mubr.f32.gmra.mxu0 %v32
  %v105 = vpop.f32.mrf.mxu0
  %v106 = vadd.f32 %v25, %v105
  %v107 = vpop.f32.mrf.mxu0
  %108 = vdwg.mxu0
  %109 = vst.msk [vmem:[%s3] sm:$0xff] %vm27, %v101
  %110 = vst.msk [vmem:[%s3 + $0x8] sm:$0xff] %vm27, %v106
  // Predicated region
  $region14: #{server_model_forward.48} parent=0 // pred_check
    _
  $region15: #{server_model_forward.48} parent=0 // pred_check_branch
    %112 = sbr.rel (0) target = $region17
  $region16: #{server_model_forward.48} parent=0 // pred_region
    _
  $region17: #{server_model_forward.48} parent=0 // pred_fallthru
    _
  // Predicated region
  $region18: #{server_model_forward.48} parent=0 // pred_check
    _
  $region19: #{server_model_forward.48} parent=0 // pred_check_branch
    %114 = sbr.rel (0) target = $region21
  $region20: #{server_model_forward.48} parent=0 // pred_region
    _
  $region21: #{server_model_forward.48} parent=0 // pred_fallthru
    _

// kernel: server_model_forward.49
$region0: #{server_model_forward.49}
  #allocation0 [shape = 'u32[]', space=smem, size = 0x4, offset = 0x4, fixed_abs, tag = 'smem constant byte address 0x4 - core index']
  #allocation1 [shape = 'u32[144,128]{1,0:T(1,128)}', space=vmem, size = 0x12000, scoped, tag = 'internal scratch']
  %s0 = inlined_call_operand.vmem [shape: f32[16,32], index: 0, kind: input, shape index: {}]
  %s1 = inlined_call_operand.vmem [shape: f32[16,32], index: 1, kind: input, shape index: {}]
  %s2 = inlined_call_operand.vmem [shape: f32[1,32], index: 2, kind: input, shape index: {}]
  %s3 = inlined_call_operand.vmem [shape: f32[1,32], index: 3, kind: input, shape index: {}]
  %s4 = inlined_call_operand.vmem [shape: f32[16,32], index: 4, kind: output, shape index: {}]
  %s5 = sld [smem:[#allocation0]]
  $region26: #{server_model_forward.49} parent=0
    _
  %s7 = ssub.s32 1, %s5
  %s8 = scalar_select 0, %s7, %s5
  // Predicated region
  $region2: #{server_model_forward.49} parent=0 // pred_check
    _
  $region3: #{server_model_forward.49} parent=0 // pred_check_branch
    %10 = sbr.rel (0) target = $region5
  $region4: #{server_model_forward.49} parent=0 // pred_region
    _
  $region5: #{server_model_forward.49} parent=0 // pred_fallthru
    _
  // Predicated region
  $region6: #{server_model_forward.49} parent=0 // pred_check
    _
  $region7: #{server_model_forward.49} parent=0 // pred_check_branch
    %12 = sbr.rel (0) target = $region9
  $region8: #{server_model_forward.49} parent=0 // pred_region
    _
  $region9: #{server_model_forward.49} parent=0 // pred_fallthru
    _
  // Predicated region
  $region10: #{server_model_forward.49} parent=0 // pred_check
    _
  $region11: #{server_model_forward.49} parent=0 // pred_check_branch
    %14 = sbr.rel (0) target = $region13
  $region12: #{server_model_forward.49} parent=0 // pred_region
    _
  $region13: #{server_model_forward.49} parent=0 // pred_fallthru
    _
  // Predicated region
  $region14: #{server_model_forward.49} parent=0 // pred_check
    _
  $region15: #{server_model_forward.49} parent=0 // pred_check_branch
    %16 = sbr.rel (0) target = $region17
  $region16: #{server_model_forward.49} parent=0 // pred_region
    _
  $region17: #{server_model_forward.49} parent=0 // pred_fallthru
    _
  %v17 = vld [vmem:[%s0] sm:$0xff]
  %v18 = vld [vmem:[%s0 + $0x8] sm:$0xff]
  %v19 = vld [vmem:[%s1] sm:$0xff]
  %v20 = vld [vmem:[%s1 + $0x8] sm:$0xff]
  %v21 = vadd.f32 %v17, %v19
  %v22 = vadd.f32 %v18, %v20
  %vm23 = vcmask 261120
  %v24 = vsel %vm23, %v21, 0.0
  %25 = vadd.xlane.f32.xlu0 %v24
  %v26 = vpop.xlane.xlu0 %25
  %v27 = vsel %vm23, %v22, 0.0
  %28 = vadd.xlane.f32.xlu0 %v27
  %v29 = vpop.xlane.xlu0 %28
  %v30 = vrcp.pop 32.0
  %v31 = vmul.f32 %v26, %v30
  %v32 = vmul.f32 %v29, %v30
  %v33 = vsub.f32 %v21, %v31
  %v34 = vsub.f32 %v22, %v32
  %v35 = vmul.f32 %v33, %v33
  %v36 = vmul.f32 %v34, %v34
  %v37 = vsel %vm23, %v35, 0.0
  %38 = vadd.xlane.f32.xlu0 %v37
  %v39 = vpop.xlane.xlu0 %38
  %v40 = vsel %vm23, %v36, 0.0
  %41 = vadd.xlane.f32.xlu0 %v40
  %v42 = vpop.xlane.xlu0 %41
  %v43 = vmul.f32 %v39, %v30
  %v44 = vmul.f32 %v42, %v30
  %v45 = vadd.f32 %v43, 1e-05
  %v46 = vadd.f32 %v44, 1e-05
  %v47 = vrsqrt.pop %v45
  %v48 = vrsqrt.pop %v46
  %v49 = vmul.f32 %v33, %v47
  %v50 = vmul.f32 %v34, %v48
  %v51 = vld [vmem:[%s2] sm:$0x1]
  %v53 = vlaneseq
  %v54 = vshrl.u32 %v53, 7
  %v55 = vsub.s32 0, %v54
  %v56 = vrot.slane %v51, %v55
  %v58 = vmul.f32 %v49, %v56
  %v59 = vmul.f32 %v50, %v56
  %v60 = vld [vmem:[%s3] sm:$0x1]
  %v62 = vlaneseq
  %v63 = vshrl.u32 %v62, 7
  %v64 = vsub.s32 0, %v63
  %v65 = vrot.slane %v60, %v64
  %v67 = vadd.f32 %v58, %v65
  %v68 = vadd.f32 %v59, %v65
  %69 = vst.msk [vmem:[%s4] sm:$0xff] %vm23, %v67
  %70 = vst.msk [vmem:[%s4 + $0x8] sm:$0xff] %vm23, %v68
  // Predicated region
  $region18: #{server_model_forward.49} parent=0 // pred_check
    _
  $region19: #{server_model_forward.49} parent=0 // pred_check_branch
    %72 = sbr.rel (0) target = $region21
  $region20: #{server_model_forward.49} parent=0 // pred_region
    _
  $region21: #{server_model_forward.49} parent=0 // pred_fallthru
    _
  // Predicated region
  $region22: #{server_model_forward.49} parent=0 // pred_check
    _
  $region23: #{server_model_forward.49} parent=0 // pred_check_branch
    %74 = sbr.rel (0) target = $region25
  $region24: #{server_model_forward.49} parent=0 // pred_region
    _
  $region25: #{server_model_forward.49} parent=0 // pred_fallthru
    _

// kernel: server_model_forward.47
$region0: #{server_model_forward.47}
  #allocation0 [shape = 'u32[]', space=smem, size = 0x4, offset = 0x4, fixed_abs, tag = 'smem constant byte address 0x4 - core index']
  #allocation1 [shape = 'u32[144,128]{1,0:T(1,128)}', space=vmem, size = 0x12000, scoped, tag = 'internal scratch']
  %s0 = inlined_call_operand.vmem [shape: f32[2,8,32], index: 0, kind: input, shape index: {}]
  %s1 = inlined_call_operand.vmem [shape: f32[2,8,32], index: 1, kind: input, shape index: {}]
  %s2 = inlined_call_operand.vmem [shape: f32[2,8,32], index: 2, kind: input, shape index: {}]
  %s3 = inlined_call_operand.vmem [shape: f32[2,8,8], index: 3, kind: input, shape index: {}]
  %s4 = inlined_call_operand.vmem [shape: f32[2,8,32], index: 4, kind: output, shape index: {}]
  %s5 = sld [smem:[#allocation0]]
  $region49: #{server_model_forward.47} parent=0
    _
  %s7 = ssub.s32 1, %s5
  %s8 = scalar_select 0, %s7, %s5
  loop: start=0, step=1, limit=4
  $region2: #{server_model_forward.47} parent=0 // loop_pre_header
    _
  $region3: #{server_model_forward.47} parent=0 // loop_header
    %s10 = sphi 0, %s14
    %p11 = scmp.ge.s32.totalorder %s10, 4
    %s20 = sphi 0, %s22
    %s23 = sphi 0, %s20
    %s24 = sphi 0, %s23
    %s40 = sphi 0, %s24
    %s46 = sphi 0, %s48
    %s49 = sphi 0, %s46
    %s50 = sphi 0, %s49
    %s66 = sphi 0, %s50
    %s72 = sphi 0, %s74
    %s75 = sphi 0, %s72
    %s76 = sphi 0, %s75
    %s92 = sphi 0, %s76
    %s98 = sphi 0, %s100
    %s101 = sphi 0, %s98
    %s102 = sphi 0, %s101
    %s118 = sphi 0, %s102
    %s124 = sphi 0, %s126
    %s127 = sphi 0, %s124
    %s128 = sphi 0, %s127
    %s144 = sphi 0, %s128
  $region4: #{server_model_forward.47} parent=0 // loop_header_branch
    %13 = sbr.rel (%p11) target = $region8
  $region5: #{server_model_forward.47} parent=0 // loop_body
    %s15 = ssub.s32 %s10, 1
    %s16 = ssub.s32 %s10, 2
    %s17 = sadd.s32 %s10, 1
    %s18 = ssub.s32 %s10, %s17
    %p19 = scmp.eq.s32.totalorder %s18, 0
    %s21 = sadd.s32 %s20, 1
    %s22 = scalar_select %p19, %s20, %s21
    %p25 = pneg %p19
    %p26 = scmp.eq.s32.totalorder %s10, 1
    %p27 = por %p25, %p26
    %p28 = scmp.ne.s32.totalorder %s20, %s23
    %p29 = scmp.eq.s32.totalorder %s10, 0
    %p30 = por %p28, %p29
    %p31 = scmp.ne.s32.totalorder %s20, %s23
    %p32 = scmp.eq.s32.totalorder %s15, 1
    %p33 = por %p31, %p32
    %p34 = scmp.ne.s32.totalorder %s23, %s24
    %p35 = scmp.eq.s32.totalorder %s15, 0
    %p36 = por %p34, %p35
    %p37 = scmp.ne.s32.totalorder %s23, %s24
    %p38 = scmp.eq.s32.totalorder %s16, 1
    %p39 = por %p37, %p38
    %p41 = scmp.ne.s32.totalorder %s24, %s40
    %p42 = scmp.eq.s32.totalorder %s16, 0
    %p43 = por %p41, %p42
    %s44 = ssub.s32 %s10, %s17
    %p45 = scmp.eq.s32.totalorder %s44, 0
    %s47 = sadd.s32 %s46, 1
    %s48 = scalar_select %p45, %s46, %s47
    %p51 = pneg %p45
    %p52 = scmp.eq.s32.totalorder %s10, 1
    %p53 = por %p51, %p52
    %p54 = scmp.ne.s32.totalorder %s46, %s49
    %p55 = scmp.eq.s32.totalorder %s10, 0
    %p56 = por %p54, %p55
    %p57 = scmp.ne.s32.totalorder %s46, %s49
    %p58 = scmp.eq.s32.totalorder %s15, 1
    %p59 = por %p57, %p58
    %p60 = scmp.ne.s32.totalorder %s49, %s50
    %p61 = scmp.eq.s32.totalorder %s15, 0
    %p62 = por %p60, %p61
    %p63 = scmp.ne.s32.totalorder %s49, %s50
    %p64 = scmp.eq.s32.totalorder %s16, 1
    %p65 = por %p63, %p64
    %p67 = scmp.ne.s32.totalorder %s50, %s66
    %p68 = scmp.eq.s32.totalorder %s16, 0
    %p69 = por %p67, %p68
    %s70 = ssub.s32 %s10, %s17
    %p71 = scmp.eq.s32.totalorder %s70, 0
    %s73 = sadd.s32 %s72, 1
    %s74 = scalar_select %p71, %s72, %s73
    %p77 = pneg %p71
    %p78 = scmp.eq.s32.totalorder %s10, 1
    %p79 = por %p77, %p78
    %p80 = scmp.ne.s32.totalorder %s72, %s75
    %p81 = scmp.eq.s32.totalorder %s10, 0
    %p82 = por %p80, %p81
    %p83 = scmp.ne.s32.totalorder %s72, %s75
    %p84 = scmp.eq.s32.totalorder %s15, 1
    %p85 = por %p83, %p84
    %p86 = scmp.ne.s32.totalorder %s75, %s76
    %p87 = scmp.eq.s32.totalorder %s15, 0
    %p88 = por %p86, %p87
    %p89 = scmp.ne.s32.totalorder %s75, %s76
    %p90 = scmp.eq.s32.totalorder %s16, 1
    %p91 = por %p89, %p90
    %p93 = scmp.ne.s32.totalorder %s76, %s92
    %p94 = scmp.eq.s32.totalorder %s16, 0
    %p95 = por %p93, %p94
    %s96 = ssub.s32 %s10, %s17
    %p97 = scmp.eq.s32.totalorder %s96, 0
    %s99 = sadd.s32 %s98, 1
    %s100 = scalar_select %p97, %s98, %s99
    %p103 = pneg %p97
    %p104 = scmp.eq.s32.totalorder %s10, 1
    %p105 = por %p103, %p104
    %p106 = scmp.ne.s32.totalorder %s98, %s101
    %p107 = scmp.eq.s32.totalorder %s10, 0
    %p108 = por %p106, %p107
    %p109 = scmp.ne.s32.totalorder %s98, %s101
    %p110 = scmp.eq.s32.totalorder %s15, 1
    %p111 = por %p109, %p110
    %p112 = scmp.ne.s32.totalorder %s101, %s102
    %p113 = scmp.eq.s32.totalorder %s15, 0
    %p114 = por %p112, %p113
    %p115 = scmp.ne.s32.totalorder %s101, %s102
    %p116 = scmp.eq.s32.totalorder %s16, 1
    %p117 = por %p115, %p116
    %p119 = scmp.ne.s32.totalorder %s102, %s118
    %p120 = scmp.eq.s32.totalorder %s16, 0
    %p121 = por %p119, %p120
    %s122 = ssub.s32 %s10, %s17
    %p123 = scmp.eq.s32.totalorder %s122, 0
    %s125 = sadd.s32 %s124, 1
    %s126 = scalar_select %p123, %s124, %s125
    %p129 = pneg %p123
    %p130 = scmp.eq.s32.totalorder %s10, 1
    %p131 = por %p129, %p130
    %p132 = scmp.ne.s32.totalorder %s124, %s127
    %p133 = scmp.eq.s32.totalorder %s10, 0
    %p134 = por %p132, %p133
    %p135 = scmp.ne.s32.totalorder %s124, %s127
    %p136 = scmp.eq.s32.totalorder %s15, 1
    %p137 = por %p135, %p136
    %p138 = scmp.ne.s32.totalorder %s127, %s128
    %p139 = scmp.eq.s32.totalorder %s15, 0
    %p140 = por %p138, %p139
    %p141 = scmp.ne.s32.totalorder %s127, %s128
    %p142 = scmp.eq.s32.totalorder %s16, 1
    %p143 = por %p141, %p142
    %p145 = scmp.ne.s32.totalorder %s128, %s144
    %p146 = scmp.eq.s32.totalorder %s16, 0
    %p147 = por %p145, %p146
    %p148 = scmp.le.s32.totalorder 1, %s10
    %p149 = scmp.lt.s32.totalorder %s10, 3
    %p150 = pnand %p148, %p149
    %p151 = pneg %p150
    // Predicated region
    $region9: #{server_model_forward.47} parent=5 // pred_check
      _
    $region10: #{server_model_forward.47} parent=5 // pred_check_branch
      %153 = sbr.rel (%p150) target = $region12
    $region11: #{server_model_forward.47} parent=5 // pred_region
      %s154 = ssub.s32 %s10, 1
    $region12: #{server_model_forward.47} parent=5 // pred_fallthru
      _
    %p155 = scmp.lt.s32.totalorder %s10, 2
    // Predicated region
    $region13: #{server_model_forward.47} parent=5 // pred_check
      %p156 = pneg %p155
    $region14: #{server_model_forward.47} parent=5 // pred_check_branch
      %158 = sbr.rel (%p156) target = $region16
    $region15: #{server_model_forward.47} parent=5 // pred_region
      // Predicated region
      $region17: #{server_model_forward.47} parent=15 // pred_check
        %p159 = pneg %p30
      $region18: #{server_model_forward.47} parent=15 // pred_check_branch
        %161 = sbr.rel (%p159) target = $region20
      $region19: #{server_model_forward.47} parent=15 // pred_region
        %p162 = scmp.lt.s32.totalorder %s10, 1
        %s163 = scalar_select %p162, %s10, 1
        %s164 = smul.addr %s163, 8
        %s165 = scalar_lea.vmem %s0, %s164
      $region20: #{server_model_forward.47} parent=15 // pred_fallthru
        _
      // Predicated region
      $region21: #{server_model_forward.47} parent=15 // pred_check
        %p166 = pneg %p56
      $region22: #{server_model_forward.47} parent=15 // pred_check_branch
        %168 = sbr.rel (%p166) target = $region24
      $region23: #{server_model_forward.47} parent=15 // pred_region
        %p169 = scmp.lt.s32.totalorder %s10, 1
        %s170 = scalar_select %p169, %s10, 1
        %s171 = smul.addr %s170, 8
        %s172 = scalar_lea.vmem %s1, %s171
      $region24: #{server_model_forward.47} parent=15 // pred_fallthru
        _
      // Predicated region
      $region25: #{server_model_forward.47} parent=15 // pred_check
        %p173 = pneg %p82
      $region26: #{server_model_forward.47} parent=15 // pred_check_branch
        %175 = sbr.rel (%p173) target = $region28
      $region27: #{server_model_forward.47} parent=15 // pred_region
        %p176 = scmp.lt.s32.totalorder %s10, 1
        %s177 = scalar_select %p176, %s10, 1
        %s178 = smul.addr %s177, 8
        %s179 = scalar_lea.vmem %s2, %s178
      $region28: #{server_model_forward.47} parent=15 // pred_fallthru
        _
      // Predicated region
      $region29: #{server_model_forward.47} parent=15 // pred_check
        %p180 = pneg %p108
      $region30: #{server_model_forward.47} parent=15 // pred_check_branch
        %182 = sbr.rel (%p180) target = $region32
      $region31: #{server_model_forward.47} parent=15 // pred_region
        %p183 = scmp.lt.s32.totalorder %s10, 1
        %s184 = scalar_select %p183, %s10, 1
        %s185 = smul.addr %s184, 8
        %s186 = scalar_lea.vmem %s3, %s185
      $region32: #{server_model_forward.47} parent=15 // pred_fallthru
        _
    $region16: #{server_model_forward.47} parent=5 // pred_fallthru
      _
    %p187 = scmp.le.s32.totalorder 1, %s10
    %p188 = scmp.lt.s32.totalorder %s10, 3
    %p189 = pnand %p187, %p188
    %p190 = pneg %p189
    // Predicated region
    $region33: #{server_model_forward.47} parent=5 // pred_check
      _
    $region34: #{server_model_forward.47} parent=5 // pred_check_branch
      %192 = sbr.rel (%p189) target = $region36
    $region35: #{server_model_forward.47} parent=5 // pred_region
      %s193 = ssub.s32 %s10, 1
      %p194 = scmp.lt.s32.totalorder %s15, 1
      %s195 = scalar_select %p194, %s15, 1
      %s196 = smul.addr %s195, 8
      %s197 = scalar_lea.vmem %s0, %s196
      %p198 = pneg %p36
      %p199 = pneg %p33
      %p200 = scmp.lt.s32.totalorder %s15, 1
      %s201 = scalar_select %p200, %s15, 1
      %s202 = smul.addr %s201, 8
      %s203 = scalar_lea.vmem %s1, %s202
      %p204 = pneg %p62
      %p205 = pneg %p59
      %p206 = scmp.lt.s32.totalorder %s15, 1
      %s207 = scalar_select %p206, %s15, 1
      %s208 = smul.addr %s207, 8
      %s209 = scalar_lea.vmem %s2, %s208
      %p210 = pneg %p88
      %p211 = pneg %p85
      %p212 = scmp.lt.s32.totalorder %s15, 1
      %s213 = scalar_select %p212, %s15, 1
      %s214 = smul.addr %s213, 8
      %s215 = scalar_lea.vmem %s3, %s214
      %p216 = pneg %p114
      %p217 = pneg %p111
      %p218 = pneg %p140
      %p219 = pneg %p137
      %p220 = scmp.lt.s32.totalorder %s15, 1
      %s221 = scalar_select %p220, %s15, 1
      %s222 = smul.addr %s221, 8
      %s223 = scalar_lea.vmem %s4, %s222
      %p224 = scmp.lt.s32.totalorder %s15, 1
      %s225 = scalar_select %p224, %s15, 1
      %s226 = smul.addr %s225, 8
      %s227 = scalar_lea.vmem %s0, %s226
      %p228 = scmp.lt.s32.totalorder %s15, 1
      %s229 = scalar_select %p228, %s15, 1
      %s230 = smul.addr %s229, 8
      %s231 = scalar_lea.vmem %s1, %s230
      %p232 = scmp.lt.s32.totalorder %s15, 1
      %s233 = scalar_select %p232, %s15, 1
      %s234 = smul.addr %s233, 8
      %s235 = scalar_lea.vmem %s2, %s234
      %p236 = scmp.lt.s32.totalorder %s15, 1
      %s237 = scalar_select %p236, %s15, 1
      %s238 = smul.addr %s237, 8
      %s239 = scalar_lea.vmem %s3, %s238
      %p240 = scmp.lt.s32.totalorder %s15, 1
      %s241 = scalar_select %p240, %s15, 1
      %s242 = smul.addr %s241, 8
      %s243 = scalar_lea.vmem %s4, %s242
      %v244 = vld [vmem:[%s227] sm:$0xff]
      %v245 = vld [vmem:[%s231] sm:$0xff]
      %v246 = vld [vmem:[%s235] sm:$0xff]
      %v247 = vld [vmem:[%s239] sm:$0xff]
      %vm248 = vcmask 130048
      %v250 = vsel %vm248, %v244, 0
      %v253 = vsel %vm248, %v245, 0
      %255 = vmatprep.subr.mxu0 0.0
      %256 = vmatpush1.xpose.msra.mxu0 0.0
      %257 = vmatprep.subr.mxu0 0.0
      %258 = vmatpush1.xpose.msra.mxu0 0.0
      %259 = vmatprep.subr.mxu0 0.0
      %260 = vmatpush1.xpose.msra.mxu0 0.0
      %261 = vmatprep.subr.mxu0 0.0
      %262 = vmatpush1.xpose.msra.mxu0 0.0
      %263 = vmatprep.subr.mxu0 0.0
      %264 = vmatpush1.xpose.msra.mxu0 0.0
      %265 = vmatprep.subr.mxu0 0.0
      %266 = vmatpush1.xpose.msra.mxu0 0.0
      %267 = vmatprep.subr.mxu0 0.0
      %268 = vmatpush1.xpose.msra.mxu0 0.0
      %269 = vmatprep.subr.mxu0 0.0
      %270 = vmatpush1.xpose.msra.mxu0 0.0
      %271 = vmatprep.subr.mxu0 0.0
      %272 = vmatpush1.xpose.msra.mxu0 0.0
      %273 = vmatprep.subr.mxu0 0.0
      %274 = vmatpush1.xpose.msra.mxu0 0.0
      %275 = vmatprep.subr.mxu0 0.0
      %276 = vmatpush1.xpose.msra.mxu0 0.0
      %277 = vmatprep.subr.mxu0 0.0
      %278 = vmatpush1.xpose.msra.mxu0 0.0
      %279 = vmatprep.subr.mxu0 0.0
      %280 = vmatpush1.xpose.msra.mxu0 0.0
      %281 = vmatprep.subr.mxu0 0.0
      %282 = vmatpush1.xpose.msra.mxu0 0.0
      %283 = vmatprep.subr.mxu0 0.0
      %284 = vmatpush1.xpose.msra.mxu0 0.0
      %285 = vmatprep.subr.mxu0 0.0
      %286 = vmatpush1.xpose.msra.mxu0 %v253
      %287 = vmatprep.subr.mxu0 0.0
      %288 = vmatpush2.xpose.msra.mxu0 0.0
      %289 = vmatprep.subr.mxu0 0.0
      %290 = vmatpush2.xpose.msra.mxu0 0.0
      %291 = vmatprep.subr.mxu0 0.0
      %292 = vmatpush2.xpose.msra.mxu0 0.0
      %293 = vmatprep.subr.mxu0 0.0
      %294 = vmatpush2.xpose.msra.mxu0 0.0
      %295 = vmatprep.subr.mxu0 0.0
      %296 = vmatpush2.xpose.msra.mxu0 0.0
      %297 = vmatprep.subr.mxu0 0.0
      %298 = vmatpush2.xpose.msra.mxu0 0.0
      %299 = vmatprep.subr.mxu0 0.0
      %300 = vmatpush2.xpose.msra.mxu0 0.0
      %301 = vmatprep.subr.mxu0 0.0
      %302 = vmatpush2.xpose.msra.mxu0 0.0
      %303 = vmatprep.subr.mxu0 0.0
      %304 = vmatpush2.xpose.msra.mxu0 0.0
      %305 = vmatprep.subr.mxu0 0.0
      %306 = vmatpush2.xpose.msra.mxu0 0.0
      %307 = vmatprep.subr.mxu0 0.0
      %308 = vmatpush2.xpose.msra.mxu0 0.0
      %309 = vmatprep.subr.mxu0 0.0
      %310 = vmatpush2.xpose.msra.mxu0 0.0
      %311 = vmatprep.subr.mxu0 0.0
      %312 = vmatpush2.xpose.msra.mxu0 0.0
      %313 = vmatprep.subr.mxu0 0.0
      %314 = vmatpush2.xpose.msra.mxu0 0.0
      %315 = vmatprep.subr.mxu0 0.0
      %316 = vmatpush2.xpose.msra.mxu0 0.0
      %317 = vmatprep.subr.mxu0 0.0
      %318 = vmatpush2.xpose.msra.mxu0 0.0
      %319 = vmatprep.mubr.f32.mxu0 0.0
      %320 = vmatmul.mubr.f32.gmra.mxu0 %v250
      %v321 = vpop.f32.mrf.mxu0
      %v322 = vadd.f32 %v247, %v321
      %v323 = vpop.f32.mrf.mxu0
      %324 = vdwg.mxu0
      %vm325 = vcmask 64512
      %v326 = vsel %vm325, %v322, -inf
      %327 = vmax.xlane.f32.xlu0 %v326
      %v328 = vpop.xlane.xlu0 %327
      %v329 = vsub.f32 %v322, %v328
      %v330 = vmul.f32 %v329, 1.442695
      %v331 = vpow.pop %v330
      %v332 = vsel %vm325, %v331, 0.0
      %333 = vadd.xlane.f32.xlu0 %v332
      %v334 = vpop.xlane.xlu0 %333
      %v335 = vrcp.pop %v334
      %v336 = vmul.f32 %v331, %v335
      %v338 = vsel %vm325, %v336, 0
      %340 = vmatprep.subr.mxu0 0.0
      %341 = vmatpush1.msra.mxu0 0.0
      %342 = vmatprep.subr.mxu0 0.0
      %343 = vmatpush1.msra.mxu0 0.0
      %344 = vmatprep.subr.mxu0 0.0
      %345 = vmatpush1.msra.mxu0 0.0
      %346 = vmatprep.subr.mxu0 0.0
      %347 = vmatpush1.msra.mxu0 0.0
      %348 = vmatprep.subr.mxu0 0.0
      %349 = vmatpush1.msra.mxu0 0.0
      %350 = vmatprep.subr.mxu0 0.0
      %351 = vmatpush1.msra.mxu0 0.0
      %352 = vmatprep.subr.mxu0 0.0
      %353 = vmatpush1.msra.mxu0 0.0
      %354 = vmatprep.subr.mxu0 0.0
      %355 = vmatpush1.msra.mxu0 0.0
      %356 = vmatprep.subr.mxu0 0.0
      %357 = vmatpush1.msra.mxu0 0.0
      %358 = vmatprep.subr.mxu0 0.0
      %359 = vmatpush1.msra.mxu0 0.0
      %360 = vmatprep.subr.mxu0 0.0
      %361 = vmatpush1.msra.mxu0 0.0
      %362 = vmatprep.subr.mxu0 0.0
      %363 = vmatpush1.msra.mxu0 0.0
      %364 = vmatprep.subr.mxu0 0.0
      %365 = vmatpush1.msra.mxu0 0.0
      %366 = vmatprep.subr.mxu0 0.0
      %367 = vmatpush1.msra.mxu0 0.0
      %368 = vmatprep.subr.mxu0 0.0
      %369 = vmatpush1.msra.mxu0 0.0
      %370 = vmatprep.subr.mxu0 0.0
      %371 = vmatpush1.msra.mxu0 %v246
      %372 = vmatprep.subr.mxu0 0.0
      %373 = vmatpush2.msra.mxu0 0.0
      %374 = vmatprep.subr.mxu0 0.0
      %375 = vmatpush2.msra.mxu0 0.0
      %376 = vmatprep.subr.mxu0 0.0
      %377 = vmatpush2.msra.mxu0 0.0
      %378 = vmatprep.subr.mxu0 0.0
      %379 = vmatpush2.msra.mxu0 0.0
      %380 = vmatprep.subr.mxu0 0.0
      %381 = vmatpush2.msra.mxu0 0.0
      %382 = vmatprep.subr.mxu0 0.0
      %383 = vmatpush2.msra.mxu0 0.0
      %384 = vmatprep.subr.mxu0 0.0
      %385 = vmatpush2.msra.mxu0 0.0
      %386 = vmatprep.subr.mxu0 0.0
      %387 = vmatpush2.msra.mxu0 0.0
      %388 = vmatprep.subr.mxu0 0.0
      %389 = vmatpush2.msra.mxu0 0.0
      %390 = vmatprep.subr.mxu0 0.0
      %391 = vmatpush2.msra.mxu0 0.0
      %392 = vmatprep.subr.mxu0 0.0
      %393 = vmatpush2.msra.mxu0 0.0
      %394 = vmatprep.subr.mxu0 0.0
      %395 = vmatpush2.msra.mxu0 0.0
      %396 = vmatprep.subr.mxu0 0.0
      %397 = vmatpush2.msra.mxu0 0.0
      %398 = vmatprep.subr.mxu0 0.0
      %399 = vmatpush2.msra.mxu0 0.0
      %400 = vmatprep.subr.mxu0 0.0
      %401 = vmatpush2.msra.mxu0 0.0
      %402 = vmatprep.subr.mxu0 0.0
      %403 = vmatpush2.msra.mxu0 0.0
      %404 = vmatprep.mubr.f32.mxu0 0.0
      %405 = vmatmul.mubr.f32.gmra.mxu0 %v338
      %v406 = vpop.f32.mrf.mxu0
      %v407 = vadd.f32 0.0, %v406
      %v408 = vpop.f32.mrf.mxu0
      %409 = vdwg.mxu0
      %410 = vrot.lane.b32.xlu0 %v244, 112
      %v411 = vpop.permute.xlu0 %410
      %412 = vrot.lane.b32.xlu0 %v245, 112
      %v413 = vpop.permute.xlu0 %412
      %v414 = vsel %vm248, %v411, 0
      %v416 = vsel %vm248, %v413, 0
      %418 = vmatprep.subr.mxu0 0.0
      %419 = vmatpush1.xpose.msra.mxu0 0.0
      %420 = vmatprep.subr.mxu0 0.0
      %421 = vmatpush1.xpose.msra.mxu0 0.0
      %422 = vmatprep.subr.mxu0 0.0
      %423 = vmatpush1.xpose.msra.mxu0 0.0
      %424 = vmatprep.subr.mxu0 0.0
      %425 = vmatpush1.xpose.msra.mxu0 0.0
      %426 = vmatprep.subr.mxu0 0.0
      %427 = vmatpush1.xpose.msra.mxu0 0.0
      %428 = vmatprep.subr.mxu0 0.0
      %429 = vmatpush1.xpose.msra.mxu0 0.0
      %430 = vmatprep.subr.mxu0 0.0
      %431 = vmatpush1.xpose.msra.mxu0 0.0
      %432 = vmatprep.subr.mxu0 0.0
      %433 = vmatpush1.xpose.msra.mxu0 0.0
      %434 = vmatprep.subr.mxu0 0.0
      %435 = vmatpush1.xpose.msra.mxu0 0.0
      %436 = vmatprep.subr.mxu0 0.0
      %437 = vmatpush1.xpose.msra.mxu0 0.0
      %438 = vmatprep.subr.mxu0 0.0
      %439 = vmatpush1.xpose.msra.mxu0 0.0
      %440 = vmatprep.subr.mxu0 0.0
      %441 = vmatpush1.xpose.msra.mxu0 0.0
      %442 = vmatprep.subr.mxu0 0.0
      %443 = vmatpush1.xpose.msra.mxu0 0.0
      %444 = vmatprep.subr.mxu0 0.0
      %445 = vmatpush1.xpose.msra.mxu0 0.0
      %446 = vmatprep.subr.mxu0 0.0
      %447 = vmatpush1.xpose.msra.mxu0 0.0
      %448 = vmatprep.subr.mxu0 0.0
      %449 = vmatpush1.xpose.msra.mxu0 %v416
      %450 = vmatprep.subr.mxu0 0.0
      %451 = vmatpush2.xpose.msra.mxu0 0.0
      %452 = vmatprep.subr.mxu0 0.0
      %453 = vmatpush2.xpose.msra.mxu0 0.0
      %454 = vmatprep.subr.mxu0 0.0
      %455 = vmatpush2.xpose.msra.mxu0 0.0
      %456 = vmatprep.subr.mxu0 0.0
      %457 = vmatpush2.xpose.msra.mxu0 0.0
      %458 = vmatprep.subr.mxu0 0.0
      %459 = vmatpush2.xpose.msra.mxu0 0.0
      %460 = vmatprep.subr.mxu0 0.0
      %461 = vmatpush2.xpose.msra.mxu0 0.0
      %462 = vmatprep.subr.mxu0 0.0
      %463 = vmatpush2.xpose.msra.mxu0 0.0
      %464 = vmatprep.subr.mxu0 0.0
      %465 = vmatpush2.xpose.msra.mxu0 0.0
      %466 = vmatprep.subr.mxu0 0.0
      %467 = vmatpush2.xpose.msra.mxu0 0.0
      %468 = vmatprep.subr.mxu0 0.0
      %469 = vmatpush2.xpose.msra.mxu0 0.0
      %470 = vmatprep.subr.mxu0 0.0
      %471 = vmatpush2.xpose.msra.mxu0 0.0
      %472 = vmatprep.subr.mxu0 0.0
      %473 = vmatpush2.xpose.msra.mxu0 0.0
      %474 = vmatprep.subr.mxu0 0.0
      %475 = vmatpush2.xpose.msra.mxu0 0.0
      %476 = vmatprep.subr.mxu0 0.0
      %477 = vmatpush2.xpose.msra.mxu0 0.0
      %478 = vmatprep.subr.mxu0 0.0
      %479 = vmatpush2.xpose.msra.mxu0 0.0
      %480 = vmatprep.subr.mxu0 0.0
      %481 = vmatpush2.xpose.msra.mxu0 0.0
      %482 = vmatprep.mubr.f32.mxu0 0.0
      %483 = vmatmul.mubr.f32.gmra.mxu0 %v414
      %v484 = vpop.f32.mrf.mxu0
      %v485 = vadd.f32 %v247, %v484
      %v486 = vpop.f32.mrf.mxu0
      %487 = vdwg.mxu0
      %v488 = vsel %vm325, %v485, -inf
      %489 = vmax.xlane.f32.xlu0 %v488
      %v490 = vpop.xlane.xlu0 %489
      %v491 = vsub.f32 %v485, %v490
      %v492 = vmul.f32 %v491, 1.442695
      %v493 = vpow.pop %v492
      %v494 = vsel %vm325, %v493, 0.0
      %495 = vadd.xlane.f32.xlu0 %v494
      %v496 = vpop.xlane.xlu0 %495
      %v497 = vrcp.pop %v496
      %v498 = vmul.f32 %v493, %v497
      %500 = vrot.lane.b32.xlu0 %v246, 112
      %v501 = vpop.permute.xlu0 %500
      %v504 = vsel %vm325, %v498, 0
      %506 = vmatprep.subr.mxu0 0.0
      %507 = vmatpush1.msra.mxu0 0.0
      %508 = vmatprep.subr.mxu0 0.0
      %509 = vmatpush1.msra.mxu0 0.0
      %510 = vmatprep.subr.mxu0 0.0
      %511 = vmatpush1.msra.mxu0 0.0
      %512 = vmatprep.subr.mxu0 0.0
      %513 = vmatpush1.msra.mxu0 0.0
      %514 = vmatprep.subr.mxu0 0.0
      %515 = vmatpush1.msra.mxu0 0.0
      %516 = vmatprep.subr.mxu0 0.0
      %517 = vmatpush1.msra.mxu0 0.0
      %518 = vmatprep.subr.mxu0 0.0
      %519 = vmatpush1.msra.mxu0 0.0
      %520 = vmatprep.subr.mxu0 0.0
      %521 = vmatpush1.msra.mxu0 0.0
      %522 = vmatprep.subr.mxu0 0.0
      %523 = vmatpush1.msra.mxu0 0.0
      %524 = vmatprep.subr.mxu0 0.0
      %525 = vmatpush1.msra.mxu0 0.0
      %526 = vmatprep.subr.mxu0 0.0
      %527 = vmatpush1.msra.mxu0 0.0
      %528 = vmatprep.subr.mxu0 0.0
      %529 = vmatpush1.msra.mxu0 0.0
      %530 = vmatprep.subr.mxu0 0.0
      %531 = vmatpush1.msra.mxu0 0.0
      %532 = vmatprep.subr.mxu0 0.0
      %533 = vmatpush1.msra.mxu0 0.0
      %534 = vmatprep.subr.mxu0 0.0
      %535 = vmatpush1.msra.mxu0 0.0
      %536 = vmatprep.subr.mxu0 0.0
      %537 = vmatpush1.msra.mxu0 %v501
      %538 = vmatprep.subr.mxu0 0.0
      %539 = vmatpush2.msra.mxu0 0.0
      %540 = vmatprep.subr.mxu0 0.0
      %541 = vmatpush2.msra.mxu0 0.0
      %542 = vmatprep.subr.mxu0 0.0
      %543 = vmatpush2.msra.mxu0 0.0
      %544 = vmatprep.subr.mxu0 0.0
      %545 = vmatpush2.msra.mxu0 0.0
      %546 = vmatprep.subr.mxu0 0.0
      %547 = vmatpush2.msra.mxu0 0.0
      %548 = vmatprep.subr.mxu0 0.0
      %549 = vmatpush2.msra.mxu0 0.0
      %550 = vmatprep.subr.mxu0 0.0
      %551 = vmatpush2.msra.mxu0 0.0
      %552 = vmatprep.subr.mxu0 0.0
      %553 = vmatpush2.msra.mxu0 0.0
      %554 = vmatprep.subr.mxu0 0.0
      %555 = vmatpush2.msra.mxu0 0.0
      %556 = vmatprep.subr.mxu0 0.0
      %557 = vmatpush2.msra.mxu0 0.0
      %558 = vmatprep.subr.mxu0 0.0
      %559 = vmatpush2.msra.mxu0 0.0
      %560 = vmatprep.subr.mxu0 0.0
      %561 = vmatpush2.msra.mxu0 0.0
      %562 = vmatprep.subr.mxu0 0.0
      %563 = vmatpush2.msra.mxu0 0.0
      %564 = vmatprep.subr.mxu0 0.0
      %565 = vmatpush2.msra.mxu0 0.0
      %566 = vmatprep.subr.mxu0 0.0
      %567 = vmatpush2.msra.mxu0 0.0
      %568 = vmatprep.subr.mxu0 0.0
      %569 = vmatpush2.msra.mxu0 0.0
      %570 = vmatprep.mubr.f32.mxu0 0.0
      %571 = vmatmul.mubr.f32.gmra.mxu0 %v504
      %v572 = vpop.f32.mrf.mxu0
      %v573 = vadd.f32 0.0, %v572
      %v574 = vpop.f32.mrf.mxu0
      %575 = vdwg.mxu0
      %577 = vrot.lane.b32.xlu0 %v573, 16
      %v578 = vpop.permute.xlu0 %577
      %v580 = vsel %vm248, %v407, %v578
      %vm581 = vcmask 261120
      %582 = vst.msk [vmem:[%s243] sm:$0xff] %vm581, %v580
      %p583 = scmp.lt.s32.totalorder %s15, 1
      %s584 = scalar_select %p583, %s15, 1
      %s585 = smul.addr %s584, 8
      %s586 = scalar_lea.vmem %s4, %s585
      // Predicated region
      $region37: #{server_model_forward.47} parent=35 // pred_check
        %p587 = pneg %p137
      $region38: #{server_model_forward.47} parent=35 // pred_check_branch
        %589 = sbr.rel (%p587) target = $region40
      $region39: #{server_model_forward.47} parent=35 // pred_region
        _
      $region40: #{server_model_forward.47} parent=35 // pred_fallthru
        _
    $region36: #{server_model_forward.47} parent=5 // pred_fallthru
      _
    %p590 = scmp.le.s32.totalorder 2, %s10
    // Predicated region
    $region41: #{server_model_forward.47} parent=5 // pred_check
      %p591 = pneg %p590
    $region42: #{server_model_forward.47} parent=5 // pred_check_branch
      %593 = sbr.rel (%p591) target = $region44
    $region43: #{server_model_forward.47} parent=5 // pred_region
      %s594 = ssub.s32 %s10, 2
      // Predicated region
      $region45: #{server_model_forward.47} parent=43 // pred_check
        %p595 = pneg %p143
      $region46: #{server_model_forward.47} parent=43 // pred_check_branch
        %597 = sbr.rel (%p595) target = $region48
      $region47: #{server_model_forward.47} parent=43 // pred_region
        %p598 = scmp.lt.s32.totalorder %s16, 1
        %s599 = scalar_select %p598, %s16, 1
        %s600 = smul.addr %s599, 8
        %s601 = scalar_lea.vmem %s4, %s600
      $region48: #{server_model_forward.47} parent=43 // pred_fallthru
        _
    $region44: #{server_model_forward.47} parent=5 // pred_fallthru
      _
  $region6: #{server_model_forward.47} parent=0 // loop_footer
    %s14 = sadd.s32 1, %s10
  $region7: #{server_model_forward.47} parent=0 // loop_footer_branch
    %9 = sbr.rel target = $region3
  $region8: #{server_model_forward.47} parent=0 // loop_exit
    _

// kernel: server_model_forward.74
$region0: #{server_model_forward.74}
  #allocation0 [shape = 'u32[]', space=smem, size = 0x4, offset = 0x4, fixed_abs, tag = 'smem constant byte address 0x4 - core index']
  #allocation1 [shape = 'u32[144,128]{1,0:T(1,128)}', space=vmem, size = 0x12000, scoped, tag = 'internal scratch']
  %s0 = inlined_call_operand.vmem [shape: f32[16,32], index: 0, kind: input, shape index: {}]
  %s1 = inlined_call_operand.vmem [shape: f32[32,64], index: 1, kind: input, shape index: {}]
  %s2 = inlined_call_operand.vmem [shape: f32[1,64], index: 2, kind: input, shape index: {}]
  %s3 = inlined_call_operand.vmem [shape: f32[16,64], index: 3, kind: output, shape index: {}]
  %s4 = sld [smem:[#allocation0]]
  $region22: #{server_model_forward.74} parent=0
    _
  %s6 = ssub.s32 1, %s4
  %s7 = scalar_select 0, %s6, %s4
  // Predicated region
  $region2: #{server_model_forward.74} parent=0 // pred_check
    _
  $region3: #{server_model_forward.74} parent=0 // pred_check_branch
    %9 = sbr.rel (0) target = $region5
  $region4: #{server_model_forward.74} parent=0 // pred_region
    _
  $region5: #{server_model_forward.74} parent=0 // pred_fallthru
    _
  // Predicated region
  $region6: #{server_model_forward.74} parent=0 // pred_check
    _
  $region7: #{server_model_forward.74} parent=0 // pred_check_branch
    %11 = sbr.rel (0) target = $region9
  $region8: #{server_model_forward.74} parent=0 // pred_region
    _
  $region9: #{server_model_forward.74} parent=0 // pred_fallthru
    _
  // Predicated region
  $region10: #{server_model_forward.74} parent=0 // pred_check
    _
  $region11: #{server_model_forward.74} parent=0 // pred_check_branch
    %13 = sbr.rel (0) target = $region13
  $region12: #{server_model_forward.74} parent=0 // pred_region
    _
  $region13: #{server_model_forward.74} parent=0 // pred_fallthru
    _
  %v14 = vld [vmem:[%s0] sm:$0xff]
  %v15 = vld [vmem:[%s0 + $0x8] sm:$0xff]
  %v16 = vld [vmem:[%s1] sm:$0xff]
  %v17 = vld [vmem:[%s1 + $0x8] sm:$0xff]
  %v18 = vld [vmem:[%s1 + $0x10] sm:$0xff]
  %v19 = vld [vmem:[%s1 + $0x18] sm:$0xff]
  %v20 = vld [vmem:[%s2] sm:$0x1]
  %v22 = vlaneseq
  %v23 = vshrl.u32 %v22, 7
  %v24 = vsub.s32 0, %v23
  %v25 = vrot.slane %v20, %v24
  %vm27 = vcmask 261120
  %v29 = vsel %vm27, %v14, 0
  %v32 = vsel %vm27, %v15, 0
  %34 = vmatprep.subr.mxu0 0.0
  %35 = vmatpush1.msra.mxu0 0.0
  %36 = vmatprep.subr.mxu0 0.0
  %37 = vmatpush1.msra.mxu0 0.0
  %38 = vmatprep.subr.mxu0 0.0
  %39 = vmatpush1.msra.mxu0 0.0
  %40 = vmatprep.subr.mxu0 0.0
  %41 = vmatpush1.msra.mxu0 0.0
  %42 = vmatprep.subr.mxu0 0.0
  %43 = vmatpush1.msra.mxu0 0.0
  %44 = vmatprep.subr.mxu0 0.0
  %45 = vmatpush1.msra.mxu0 0.0
  %46 = vmatprep.subr.mxu0 0.0
  %47 = vmatpush1.msra.mxu0 0.0
  %48 = vmatprep.subr.mxu0 0.0
  %49 = vmatpush1.msra.mxu0 0.0
  %50 = vmatprep.subr.mxu0 0.0
  %51 = vmatpush1.msra.mxu0 0.0
  %52 = vmatprep.subr.mxu0 0.0
  %53 = vmatpush1.msra.mxu0 0.0
  %54 = vmatprep.subr.mxu0 0.0
  %55 = vmatpush1.msra.mxu0 0.0
  %56 = vmatprep.subr.mxu0 0.0
  %57 = vmatpush1.msra.mxu0 0.0
  %58 = vmatprep.subr.mxu0 0.0
  %59 = vmatpush1.msra.mxu0 %v19
  %60 = vmatprep.subr.mxu0 0.0
  %61 = vmatpush1.msra.mxu0 %v18
  %62 = vmatprep.subr.mxu0 0.0
  %63 = vmatpush1.msra.mxu0 %v17
  %64 = vmatprep.subr.mxu0 0.0
  %65 = vmatpush1.msra.mxu0 %v16
  %66 = vmatprep.subr.mxu0 0.0
  %67 = vmatpush2.msra.mxu0 0.0
  %68 = vmatprep.subr.mxu0 0.0
  %69 = vmatpush2.msra.mxu0 0.0
  %70 = vmatprep.subr.mxu0 0.0
  %71 = vmatpush2.msra.mxu0 0.0
  %72 = vmatprep.subr.mxu0 0.0
  %73 = vmatpush2.msra.mxu0 0.0
  %74 = vmatprep.subr.mxu0 0.0
  %75 = vmatpush2.msra.mxu0 0.0
  %76 = vmatprep.subr.mxu0 0.0
  %77 = vmatpush2.msra.mxu0 0.0
  %78 = vmatprep.subr.mxu0 0.0
  %79 = vmatpush2.msra.mxu0 0.0
  %80 = vmatprep.subr.mxu0 0.0
  %81 = vmatpush2.msra.mxu0 0.0
  %82 = vmatprep.subr.mxu0 0.0
  %83 = vmatpush2.msra.mxu0 0.0
  %84 = vmatprep.subr.mxu0 0.0
  %85 = vmatpush2.msra.mxu0 0.0
  %86 = vmatprep.subr.mxu0 0.0
  %87 = vmatpush2.msra.mxu0 0.0
  %88 = vmatprep.subr.mxu0 0.0
  %89 = vmatpush2.msra.mxu0 0.0
  %90 = vmatprep.subr.mxu0 0.0
  %91 = vmatpush2.msra.mxu0 0.0
  %92 = vmatprep.subr.mxu0 0.0
  %93 = vmatpush2.msra.mxu0 0.0
  %94 = vmatprep.subr.mxu0 0.0
  %95 = vmatpush2.msra.mxu0 0.0
  %96 = vmatprep.subr.mxu0 0.0
  %97 = vmatpush2.msra.mxu0 0.0
  %98 = vmatprep.mubr.f32.mxu0 0.0
  %99 = vmatmul.mubr.f32.gmra.mxu0 %v29
  %v100 = vpop.f32.mrf.mxu0
  %v101 = vadd.f32 %v25, %v100
  %v102 = vpop.f32.mrf.mxu0
  %103 = vmatprep.mubr.f32.mxu0 0.0
  %104 = vmatmul.mubr.f32.gmra.mxu0 %v32
  %v105 = vpop.f32.mrf.mxu0
  %v106 = vadd.f32 %v25, %v105
  %v107 = vpop.f32.mrf.mxu0
  %108 = vdwg.mxu0
  %vm109 = vcmask 523264
  %110 = vst.msk [vmem:[%s3] sm:$0xff] %vm109, %v101
  %111 = vst.msk [vmem:[%s3 + $0x8] sm:$0xff] %vm109, %v106
  // Predicated region
  $region14: #{server_model_forward.74} parent=0 // pred_check
    _
  $region15: #{server_model_forward.74} parent=0 // pred_check_branch
    %113 = sbr.rel (0) target = $region17
  $region16: #{server_model_forward.74} parent=0 // pred_region
    _
  $region17: #{server_model_forward.74} parent=0 // pred_fallthru
    _
  // Predicated region
  $region18: #{server_model_forward.74} parent=0 // pred_check
    _
  $region19: #{server_model_forward.74} parent=0 // pred_check_branch
    %115 = sbr.rel (0) target = $region21
  $region20: #{server_model_forward.74} parent=0 // pred_region
    _
  $region21: #{server_model_forward.74} parent=0 // pred_fallthru
    _

// kernel: server_model_forward.50
$region0: #{server_model_forward.50}
  #allocation0 [shape = 'u32[]', space=smem, size = 0x4, offset = 0x4, fixed_abs, tag = 'smem constant byte address 0x4 - core index']
  #allocation1 [shape = 'u32[144,128]{1,0:T(1,128)}', space=vmem, size = 0x12000, scoped, tag = 'internal scratch']
  %s0 = inlined_call_operand.vmem [shape: f32[16,32], index: 0, kind: input, shape index: {}]
  %s1 = inlined_call_operand.vmem [shape: f32[32,64], index: 1, kind: input, shape index: {}]
  %s2 = inlined_call_operand.vmem [shape: f32[1,64], index: 2, kind: input, shape index: {}]
  %s3 = inlined_call_operand.vmem [shape: f32[64,32], index: 3, kind: input, shape index: {}]
  %s4 = inlined_call_operand.vmem [shape: f32[1,32], index: 4, kind: input, shape index: {}]
  %s5 = inlined_call_operand.vmem [shape: f32[16,32], index: 5, kind: output, shape index: {}]
  %s6 = sld [smem:[#allocation0]]
  $region30: #{server_model_forward.50} parent=0
    _
  %s8 = ssub.s32 1, %s6
  %s9 = scalar_select 0, %s8, %s6
  // Predicated region
  $region2: #{server_model_forward.50} parent=0 // pred_check
    _
  $region3: #{server_model_forward.50} parent=0 // pred_check_branch
    %11 = sbr.rel (0) target = $region5
  $region4: #{server_model_forward.50} parent=0 // pred_region
    _
  $region5: #{server_model_forward.50} parent=0 // pred_fallthru
    _
  // Predicated region
  $region6: #{server_model_forward.50} parent=0 // pred_check
    _
  $region7: #{server_model_forward.50} parent=0 // pred_check_branch
    %13 = sbr.rel (0) target = $region9
  $region8: #{server_model_forward.50} parent=0 // pred_region
    _
  $region9: #{server_model_forward.50} parent=0 // pred_fallthru
    _
  // Predicated region
  $region10: #{server_model_forward.50} parent=0 // pred_check
    _
  $region11: #{server_model_forward.50} parent=0 // pred_check_branch
    %15 = sbr.rel (0) target = $region13
  $region12: #{server_model_forward.50} parent=0 // pred_region
    _
  $region13: #{server_model_forward.50} parent=0 // pred_fallthru
    _
  // Predicated region
  $region14: #{server_model_forward.50} parent=0 // pred_check
    _
  $region15: #{server_model_forward.50} parent=0 // pred_check_branch
    %17 = sbr.rel (0) target = $region17
  $region16: #{server_model_forward.50} parent=0 // pred_region
    _
  $region17: #{server_model_forward.50} parent=0 // pred_fallthru
    _
  // Predicated region
  $region18: #{server_model_forward.50} parent=0 // pred_check
    _
  $region19: #{server_model_forward.50} parent=0 // pred_check_branch
    %19 = sbr.rel (0) target = $region21
  $region20: #{server_model_forward.50} parent=0 // pred_region
    _
  $region21: #{server_model_forward.50} parent=0 // pred_fallthru
    _
  %v20 = vld [vmem:[%s0] sm:$0xff]
  %v21 = vld [vmem:[%s0 + $0x8] sm:$0xff]
  %v22 = vld [vmem:[%s1] sm:$0xff]
  %v23 = vld [vmem:[%s1 + $0x8] sm:$0xff]
  %v24 = vld [vmem:[%s1 + $0x10] sm:$0xff]
  %v25 = vld [vmem:[%s1 + $0x18] sm:$0xff]
  %v26 = vld [vmem:[%s2] sm:$0x1]
  %v28 = vlaneseq
  %v29 = vshrl.u32 %v28, 7
  %v30 = vsub.s32 0, %v29
  %v31 = vrot.slane %v26, %v30
  %vm33 = vcmask 261120
  %v35 = vsel %vm33, %v20, 0
  %v38 = vsel %vm33, %v21, 0
  %40 = vmatprep.subr.mxu0 0.0
  %41 = vmatpush1.msra.mxu0 0.0
  %42 = vmatprep.subr.mxu0 0.0
  %43 = vmatpush1.msra.mxu0 0.0
  %44 = vmatprep.subr.mxu0 0.0
  %45 = vmatpush1.msra.mxu0 0.0
  %46 = vmatprep.subr.mxu0 0.0
  %47 = vmatpush1.msra.mxu0 0.0
  %48 = vmatprep.subr.mxu0 0.0
  %49 = vmatpush1.msra.mxu0 0.0
  %50 = vmatprep.subr.mxu0 0.0
  %51 = vmatpush1.msra.mxu0 0.0
  %52 = vmatprep.subr.mxu0 0.0
  %53 = vmatpush1.msra.mxu0 0.0
  %54 = vmatprep.subr.mxu0 0.0
  %55 = vmatpush1.msra.mxu0 0.0
  %56 = vmatprep.subr.mxu0 0.0
  %57 = vmatpush1.msra.mxu0 0.0
  %58 = vmatprep.subr.mxu0 0.0
  %59 = vmatpush1.msra.mxu0 0.0
  %60 = vmatprep.subr.mxu0 0.0
  %61 = vmatpush1.msra.mxu0 0.0
  %62 = vmatprep.subr.mxu0 0.0
  %63 = vmatpush1.msra.mxu0 0.0
  %64 = vmatprep.subr.mxu0 0.0
  %65 = vmatpush1.msra.mxu0 %v25
  %66 = vmatprep.subr.mxu0 0.0
  %67 = vmatpush1.msra.mxu0 %v24
  %68 = vmatprep.subr.mxu0 0.0
  %69 = vmatpush1.msra.mxu0 %v23
  %70 = vmatprep.subr.mxu0 0.0
  %71 = vmatpush1.msra.mxu0 %v22
  %72 = vmatprep.subr.mxu0 0.0
  %73 = vmatpush2.msra.mxu0 0.0
  %74 = vmatprep.subr.mxu0 0.0
  %75 = vmatpush2.msra.mxu0 0.0
  %76 = vmatprep.subr.mxu0 0.0
  %77 = vmatpush2.msra.mxu0 0.0
  %78 = vmatprep.subr.mxu0 0.0
  %79 = vmatpush2.msra.mxu0 0.0
  %80 = vmatprep.subr.mxu0 0.0
  %81 = vmatpush2.msra.mxu0 0.0
  %82 = vmatprep.subr.mxu0 0.0
  %83 = vmatpush2.msra.mxu0 0.0
  %84 = vmatprep.subr.mxu0 0.0
  %85 = vmatpush2.msra.mxu0 0.0
  %86 = vmatprep.subr.mxu0 0.0
  %87 = vmatpush2.msra.mxu0 0.0
  %88 = vmatprep.subr.mxu0 0.0
  %89 = vmatpush2.msra.mxu0 0.0
  %90 = vmatprep.subr.mxu0 0.0
  %91 = vmatpush2.msra.mxu0 0.0
  %92 = vmatprep.subr.mxu0 0.0
  %93 = vmatpush2.msra.mxu0 0.0
  %94 = vmatprep.subr.mxu0 0.0
  %95 = vmatpush2.msra.mxu0 0.0
  %96 = vmatprep.subr.mxu0 0.0
  %97 = vmatpush2.msra.mxu0 0.0
  %98 = vmatprep.subr.mxu0 0.0
  %99 = vmatpush2.msra.mxu0 0.0
  %100 = vmatprep.subr.mxu0 0.0
  %101 = vmatpush2.msra.mxu0 0.0
  %102 = vmatprep.subr.mxu0 0.0
  %103 = vmatpush2.msra.mxu0 0.0
  %104 = vmatprep.mubr.f32.mxu0 0.0
  %105 = vmatmul.mubr.f32.gmra.mxu0 %v35
  %v106 = vpop.f32.mrf.mxu0
  %v107 = vadd.f32 %v31, %v106
  %v108 = vpop.f32.mrf.mxu0
  %109 = vmatprep.mubr.f32.mxu0 0.0
  %110 = vmatmul.mubr.f32.gmra.mxu0 %v38
  %v111 = vpop.f32.mrf.mxu0
  %v112 = vadd.f32 %v31, %v111
  %v113 = vpop.f32.mrf.mxu0
  %114 = vdwg.mxu0
  %v115 = vmax.f32 %v107, 0.0
  %v116 = vmax.f32 %v112, 0.0
  %v117 = vld [vmem:[%s3] sm:$0xff]
  %v118 = vld [vmem:[%s3 + $0x8] sm:$0xff]
  %v119 = vld [vmem:[%s3 + $0x10] sm:$0xff]
  %v120 = vld [vmem:[%s3 + $0x18] sm:$0xff]
  %v121 = vld [vmem:[%s3 + $0x20] sm:$0xff]
  %v122 = vld [vmem:[%s3 + $0x28] sm:$0xff]
  %v123 = vld [vmem:[%s3 + $0x30] sm:$0xff]
  %v124 = vld [vmem:[%s3 + $0x38] sm:$0xff]
  %v125 = vld [vmem:[%s4] sm:$0x1]
  %v127 = vlaneseq
  %v128 = vshrl.u32 %v127, 7
  %v129 = vsub.s32 0, %v128
  %v130 = vrot.slane %v125, %v129
  %vm132 = vcmask 523264
  %v134 = vsel %vm132, %v115, 0
  %v137 = vsel %vm132, %v116, 0
  %139 = vmatprep.subr.mxu0 0.0
  %140 = vmatpush1.msra.mxu0 0.0
  %141 = vmatprep.subr.mxu0 0.0
  %142 = vmatpush1.msra.mxu0 0.0
  %143 = vmatprep.subr.mxu0 0.0
  %144 = vmatpush1.msra.mxu0 0.0
  %145 = vmatprep.subr.mxu0 0.0
  %146 = vmatpush1.msra.mxu0 0.0
  %147 = vmatprep.subr.mxu0 0.0
  %148 = vmatpush1.msra.mxu0 0.0
  %149 = vmatprep.subr.mxu0 0.0
  %150 = vmatpush1.msra.mxu0 0.0
  %151 = vmatprep.subr.mxu0 0.0
  %152 = vmatpush1.msra.mxu0 0.0
  %153 = vmatprep.subr.mxu0 0.0
  %154 = vmatpush1.msra.mxu0 0.0
  %155 = vmatprep.subr.mxu0 0.0
  %156 = vmatpush1.msra.mxu0 %v124
  %157 = vmatprep.subr.mxu0 0.0
  %158 = vmatpush1.msra.mxu0 %v123
  %159 = vmatprep.subr.mxu0 0.0
  %160 = vmatpush1.msra.mxu0 %v122
  %161 = vmatprep.subr.mxu0 0.0
  %162 = vmatpush1.msra.mxu0 %v121
  %163 = vmatprep.subr.mxu0 0.0
  %164 = vmatpush1.msra.mxu0 %v120
  %165 = vmatprep.subr.mxu0 0.0
  %166 = vmatpush1.msra.mxu0 %v119
  %167 = vmatprep.subr.mxu0 0.0
  %168 = vmatpush1.msra.mxu0 %v118
  %169 = vmatprep.subr.mxu0 0.0
  %170 = vmatpush1.msra.mxu0 %v117
  %171 = vmatprep.subr.mxu0 0.0
  %172 = vmatpush2.msra.mxu0 0.0
  %173 = vmatprep.subr.mxu0 0.0
  %174 = vmatpush2.msra.mxu0 0.0
  %175 = vmatprep.subr.mxu0 0.0
  %176 = vmatpush2.msra.mxu0 0.0
  %177 = vmatprep.subr.mxu0 0.0
  %178 = vmatpush2.msra.mxu0 0.0
  %179 = vmatprep.subr.mxu0 0.0
  %180 = vmatpush2.msra.mxu0 0.0
  %181 = vmatprep.subr.mxu0 0.0
  %182 = vmatpush2.msra.mxu0 0.0
  %183 = vmatprep.subr.mxu0 0.0
  %184 = vmatpush2.msra.mxu0 0.0
  %185 = vmatprep.subr.mxu0 0.0
  %186 = vmatpush2.msra.mxu0 0.0
  %187 = vmatprep.subr.mxu0 0.0
  %188 = vmatpush2.msra.mxu0 0.0
  %189 = vmatprep.subr.mxu0 0.0
  %190 = vmatpush2.msra.mxu0 0.0
  %191 = vmatprep.subr.mxu0 0.0
  %192 = vmatpush2.msra.mxu0 0.0
  %193 = vmatprep.subr.mxu0 0.0
  %194 = vmatpush2.msra.mxu0 0.0
  %195 = vmatprep.subr.mxu0 0.0
  %196 = vmatpush2.msra.mxu0 0.0
  %197 = vmatprep.subr.mxu0 0.0
  %198 = vmatpush2.msra.mxu0 0.0
  %199 = vmatprep.subr.mxu0 0.0
  %200 = vmatpush2.msra.mxu0 0.0
  %201 = vmatprep.subr.mxu0 0.0
  %202 = vmatpush2.msra.mxu0 0.0
  %203 = vmatprep.mubr.f32.mxu0 0.0
  %204 = vmatmul.mubr.f32.gmra.mxu0 %v134
  %v205 = vpop.f32.mrf.mxu0
  %v206 = vadd.f32 %v130, %v205
  %v207 = vpop.f32.mrf.mxu0
  %208 = vmatprep.mubr.f32.mxu0 0.0
  %209 = vmatmul.mubr.f32.gmra.mxu0 %v137
  %v210 = vpop.f32.mrf.mxu0
  %v211 = vadd.f32 %v130, %v210
  %v212 = vpop.f32.mrf.mxu0
  %213 = vdwg.mxu0
  %214 = vst.msk [vmem:[%s5] sm:$0xff] %vm33, %v206
  %215 = vst.msk [vmem:[%s5 + $0x8] sm:$0xff] %vm33, %v211
  // Predicated region
  $region22: #{server_model_forward.50} parent=0 // pred_check
    _
  $region23: #{server_model_forward.50} parent=0 // pred_check_branch
    %217 = sbr.rel (0) target = $region25
  $region24: #{server_model_forward.50} parent=0 // pred_region
    _
  $region25: #{server_model_forward.50} parent=0 // pred_fallthru
    _
  // Predicated region
  $region26: #{server_model_forward.50} parent=0 // pred_check
    _
  $region27: #{server_model_forward.50} parent=0 // pred_check_branch
    %219 = sbr.rel (0) target = $region29
  $region28: #{server_model_forward.50} parent=0 // pred_region
    _
  $region29: #{server_model_forward.50} parent=0 // pred_fallthru
    _

</llo_original>
